<compile_context>
chip_gen: v6e
topology: v6e:2x2x1
jax: 0.10.0
libtpu: 0.0.40
codegen_flags: <defaults>
</compile_context>

<pallas_src>
import jax
import jax.numpy as jnp
from jax.experimental import pallas as pl
from jax.experimental.pallas import tpu as pltpu


# ---------------------------------------------------------------------------
# Kernel: whole MLP forward for one batch tile, fused in VMEM.
# ---------------------------------------------------------------------------
def generator_kernel(x_ref,
                     w1_ref, b1_ref,
                     w2_ref, b2_ref,
                     w3_ref, b3_ref,
                     w4_ref, b4_ref,
                     w5_ref, b5_ref,
                     o_ref):
    def dense(h_bf16, w_ref, b_ref, relu):
        # MXU: bf16 x bf16 -> f32 accumulate.
        y = jnp.dot(h_bf16, w_ref[...], preferred_element_type=jnp.float32)
        # VPU: bias add (+ ReLU) in f32; (1, N) bias broadcasts over rows.
        y = y + b_ref[...]
        if relu:
            y = jnp.maximum(y, 0.0)
        return y

    h = x_ref[...]                                            # already bf16
    h = dense(h, w1_ref, b1_ref, True).astype(jnp.bfloat16)
    h = dense(h, w2_ref, b2_ref, True).astype(jnp.bfloat16)
    h = dense(h, w3_ref, b3_ref, True).astype(jnp.bfloat16)
    h = dense(h, w4_ref, b4_ref, True).astype(jnp.bfloat16)
    o_ref[...] = dense(h, w5_ref, b5_ref, False)              # f32, unmasked vst


# ---------------------------------------------------------------------------
# Host-side helpers
# ---------------------------------------------------------------------------
def _round_up(n, m):
    return ((n + m - 1) // m) * m


def _tensorcores_per_chip():
    """Best-effort TC count (v7x = 2, v5e/v6e = 1). Safe fallback: 1."""
    try:
        info = pltpu.get_tpu_info()
        for attr in ("num_tensorcores", "tensorcores_per_chip", "num_cores",
                     "core_count"):
            v = getattr(info, attr, None)
            if v:
                return int(v)
    except Exception:
        pass
    try:
        v = getattr(jax.devices()[0], "num_cores", None)
        if v:
            return int(v)
    except Exception:
        pass
    return 1


def _default_min_steps(B):
    cores = _tensorcores_per_chip()
    if cores <= 1 or B < 32 * cores:
        return 1           # single TC: fewer grid steps = less per-step overhead
    return 2 * cores       # multi-TC (v7x): two steps per core -> both cores busy


def _pick_batch_tile(B, min_steps=1):
    candidates = (2048, 1024, 512, 256, 128, 64, 32, 16)  # multiples of 16 (bf16)
    for t in candidates:
        if t <= B and B % t == 0 and B // t >= min_steps:
            return t
    for t in candidates:   # could not honor min_steps: fall back to largest tile
        if t <= B and B % t == 0:
            return t
    return B               # tiny/odd batch: one full-extent block (legal)


def prepare_generator_params(params):
    """One-time prep: bf16 weights, f32 biases; pad ONLY the last layer's output
    dim to a multiple of 128 (lane-dense unmasked output store).  Returns
    (flat_params, out_dim)."""
    out_dim = params[-1][0].shape[1]
    out_pad = _round_up(out_dim, 128)
    flat = []
    n = len(params)
    for li, (w, b) in enumerate(params):
        w = jnp.asarray(w, jnp.bfloat16)
        b = jnp.asarray(b, jnp.float32).reshape(1, -1)
        if li == n - 1 and out_pad != out_dim:
            w = jnp.zeros((w.shape[0], out_pad), jnp.bfloat16).at[:, :out_dim].set(w)
            b = jnp.zeros((1, out_pad), jnp.float32).at[:, :out_dim].set(b)
        flat.extend((w, b))
    return tuple(flat), out_dim


def generator_forward(x, flat_params, *, out_dim, batch_tile=None):
    """x: (B, in_dim) f32/bf16. flat_params: output of prepare_generator_params."""
    B, in_dim = x.shape
    out_pad = flat_params[-1].shape[1]

    if batch_tile is None:
        batch_tile = _pick_batch_tile(B, _default_min_steps(B))
    assert B % batch_tile == 0, "batch_tile must divide the batch"
    assert batch_tile == B or batch_tile % 16 == 0, \
        "batch_tile must be a multiple of 16 (bf16 sublane packing) or the full batch"

    xb = x.astype(jnp.bfloat16)   # halve the dominant HBM read stream

    in_specs = [pl.BlockSpec((batch_tile, in_dim), lambda i: (i, 0))]
    for a in flat_params:
        # Full-extent block + constant index_map -> fetched once, stays resident.
        in_specs.append(pl.BlockSpec(a.shape, lambda i: (0, 0)))
    out_specs = pl.BlockSpec((batch_tile, out_pad), lambda i: (i, 0))

    # VMEM budget derived from actual block footprint (double-buffered streams)
    # plus headroom for in-kernel f32 activations / compiler scratch.
    stream_bytes = 2 * (batch_tile * in_dim * 2 + batch_tile * out_pad * 4)
    resident_bytes = 2 * sum(int(a.size) * a.dtype.itemsize for a in flat_params)
    max_width = max(a.shape[1] for a in flat_params[0::2])
    act_bytes = 4 * batch_tile * max_width * 4
    vmem_limit = min(64 << 20,
                     _round_up(stream_bytes + resident_bytes + act_bytes, 1 << 20)
                     + (8 << 20))

    weights = flat_params[0::2]
    flops = 2 * B * sum(int(w.shape[0]) * int(w.shape[1]) for w in weights)
    bytes_accessed = (int(xb.size) * 2 + B * out_pad * 4
                      + sum(int(a.size) * a.dtype.itemsize for a in flat_params))

    yp = pl.pallas_call(
        generator_kernel,
        out_shape=jax.ShapeDtypeStruct((B, out_pad), jnp.float32),
        grid_spec=pl.GridSpec(
            grid=(B // batch_tile,),
            in_specs=in_specs,
            out_specs=out_specs,
        ),
        compiler_params=pltpu.CompilerParams(
            dimension_semantics=("parallel",),
            vmem_limit_bytes=int(vmem_limit),
        ),
        cost_estimate=pl.CostEstimate(
            flops=flops, transcendentals=0, bytes_accessed=bytes_accessed),
    )(xb, *flat_params)

    y = yp[:, :out_dim]                 # drop the lane padding
    if x.dtype != jnp.float32:
        y = y.astype(x.dtype)
    return y


# ---------------------------------------------------------------------------
# Params + references
# ---------------------------------------------------------------------------
def init_generator_params(key, in_dim, out_dim, num_units):
    """Deterministic synthetic init (PyTorch-Linear-style uniform bounds), f32."""
    dims = [in_dim, num_units * 8, num_units * 4, num_units * 2, num_units, out_dim]
    params = []
    for li in range(5):
        fan_in, fan_out = dims[li], dims[li + 1]
        key, kw, kb = jax.random.split(key, 3)
        bound = 1.0 / jnp.sqrt(fan_in)
        w = jax.random.uniform(kw, (fan_in, fan_out), jnp.float32, -bound, bound)
        b = jax.random.uniform(kb, (1, fan_out), jnp.float32, -bound, bound)
        params.append((w, b))
    return params


def generator_reference(x, params, *, bf16_matmul=False):
    h = x.astype(jnp.float32)
    for i, (w, b) in enumerate(params):
        if bf16_matmul:
            h = jnp.dot(h.astype(jnp.bfloat16), w.astype(jnp.bfloat16),
                        preferred_element_type=jnp.float32)
        else:
            h = jnp.dot(h, w, preferred_element_type=jnp.float32)
        h = h + b
        if i < len(params) - 1:
            h = jnp.maximum(h, 0.0)
    return h


# ---------------------------------------------------------------------------
if __name__ == "__main__":
    key = jax.random.PRNGKey(0)
    in_dim, out_dim, num_units = 32, 16, 32   # hidden widths: 256, 128, 64, 32
    batch = 256

    kx, kp = jax.random.split(key)
    x = jax.random.normal(kx, (batch, in_dim), jnp.float32)
    params = init_generator_params(kp, in_dim, out_dim, num_units)

    # One-time weight prep (bf16 + last-layer lane padding), then jit the forward.
    flat_params, out_dim_p = prepare_generator_params(params)
    fwd = jax.jit(generator_forward, static_argnames=("out_dim", "batch_tile"))

    y = jax.block_until_ready(fwd(x, flat_params, out_dim=out_dim_p))
    assert y.shape == (batch, out_dim)

    # Tight check vs a reference that mimics the kernel's bf16 matmul inputs.
    y_bf16_ref = generator_reference(x, params, bf16_matmul=True)
    assert jnp.allclose(y, y_bf16_ref, atol=2e-3, rtol=2e-3), \
        float(jnp.max(jnp.abs(y - y_bf16_ref)))

    # Loose check vs the pure-f32 module semantics (bf16 weights/x ~1e-2 rel err).
    y_f32_ref = generator_reference(x, params, bf16_matmul=False)
    assert jnp.allclose(y, y_f32_ref, atol=5e-2, rtol=5e-2), \
        float(jnp.max(jnp.abs(y - y_f32_ref)))

    print("KERNEL_OK")
</pallas_src>

<mosaic_0001>
module attributes {stable_mosaic.version = 11 : i64} {
  func.func @generator_kernel(%arg0: i32, %arg1: memref<256x32xbf16, #tpu.memory_space<vmem>>, %arg2: memref<32x256xbf16, #tpu.memory_space<vmem>>, %arg3: memref<1x256xf32, #tpu.memory_space<vmem>>, %arg4: memref<256x128xbf16, #tpu.memory_space<vmem>>, %arg5: memref<1x128xf32, #tpu.memory_space<vmem>>, %arg6: memref<128x64xbf16, #tpu.memory_space<vmem>>, %arg7: memref<1x64xf32, #tpu.memory_space<vmem>>, %arg8: memref<64x32xbf16, #tpu.memory_space<vmem>>, %arg9: memref<1x32xf32, #tpu.memory_space<vmem>>, %arg10: memref<32x128xbf16, #tpu.memory_space<vmem>>, %arg11: memref<1x128xf32, #tpu.memory_space<vmem>>, %arg12: memref<256x128xf32, #tpu.memory_space<vmem>>) attributes {dimension_semantics = [#tpu.dimension_semantics<parallel>], iteration_bounds = array<i64: 1>, scalar_prefetch = 0 : i64, scratch_operands = 0 : i64, tpu.core_type = #tpu.core_type<tc>, window_params = [{transform_indices = @transform_0, window_bounds = array<i64: 256, 32>}, {pipeline_mode = #tpu.pipeline_mode<synchronous>, transform_indices = @transform_1, window_bounds = array<i64: 32, 256>}, {pipeline_mode = #tpu.pipeline_mode<synchronous>, transform_indices = @transform_2, window_bounds = array<i64: 1, 256>}, {pipeline_mode = #tpu.pipeline_mode<synchronous>, transform_indices = @transform_3, window_bounds = array<i64: 256, 128>}, {pipeline_mode = #tpu.pipeline_mode<synchronous>, transform_indices = @transform_4, window_bounds = array<i64: 1, 128>}, {pipeline_mode = #tpu.pipeline_mode<synchronous>, transform_indices = @transform_5, window_bounds = array<i64: 128, 64>}, {pipeline_mode = #tpu.pipeline_mode<synchronous>, transform_indices = @transform_6, window_bounds = array<i64: 1, 64>}, {pipeline_mode = #tpu.pipeline_mode<synchronous>, transform_indices = @transform_7, window_bounds = array<i64: 64, 32>}, {pipeline_mode = #tpu.pipeline_mode<synchronous>, transform_indices = @transform_8, window_bounds = array<i64: 1, 32>}, {pipeline_mode = #tpu.pipeline_mode<synchronous>, transform_indices = @transform_9, window_bounds = array<i64: 32, 128>}, {pipeline_mode = #tpu.pipeline_mode<synchronous>, transform_indices = @transform_10, window_bounds = array<i64: 1, 128>}, {transform_indices = @transform_11, window_bounds = array<i64: 256, 128>}]} {
    %c0 = arith.constant 0 : index
    %c0_0 = arith.constant 0 : index
    %0 = vector.load %arg1[%c0, %c0_0] : memref<256x32xbf16, #tpu.memory_space<vmem>>, vector<256x32xbf16>
    %c0_1 = arith.constant 0 : index
    %c0_2 = arith.constant 0 : index
    %1 = vector.load %arg2[%c0_1, %c0_2] : memref<32x256xbf16, #tpu.memory_space<vmem>>, vector<32x256xbf16>
    %cst = arith.constant dense<0.000000e+00> : vector<256x256xf32>
    %2 = tpu.matmul %0, %1, %cst {dimension_numbers = #tpu.dot_dimension_numbers<[1], [0], [0], [1], [0, 0, 1, 1], [], []>} : vector<256x32xbf16>, vector<32x256xbf16>, vector<256x256xf32> -> vector<256x256xf32>
    %c0_3 = arith.constant 0 : index
    %c0_4 = arith.constant 0 : index
    %3 = vector.load %arg3[%c0_3, %c0_4] : memref<1x256xf32, #tpu.memory_space<vmem>>, vector<1x256xf32>
    %4 = vector.broadcast %3 : vector<1x256xf32> to vector<256x256xf32>
    %5 = arith.addf %2, %4 : vector<256x256xf32>
    %cst_5 = arith.constant 0.000000e+00 : f32
    %6 = vector.broadcast %cst_5 : f32 to vector<256x256xf32>
    %7 = arith.maximumf %5, %6 : vector<256x256xf32>
    %8 = arith.truncf %7 : vector<256x256xf32> to vector<256x256xbf16>
    %c0_6 = arith.constant 0 : index
    %c0_7 = arith.constant 0 : index
    %9 = vector.load %arg4[%c0_6, %c0_7] : memref<256x128xbf16, #tpu.memory_space<vmem>>, vector<256x128xbf16>
    %cst_8 = arith.constant dense<0.000000e+00> : vector<256x128xf32>
    %10 = tpu.matmul %8, %9, %cst_8 {dimension_numbers = #tpu.dot_dimension_numbers<[1], [0], [0], [1], [0, 0, 1, 1], [], []>} : vector<256x256xbf16>, vector<256x128xbf16>, vector<256x128xf32> -> vector<256x128xf32>
    %c0_9 = arith.constant 0 : index
    %c0_10 = arith.constant 0 : index
    %11 = vector.load %arg5[%c0_9, %c0_10] : memref<1x128xf32, #tpu.memory_space<vmem>>, vector<1x128xf32>
    %12 = vector.broadcast %11 : vector<1x128xf32> to vector<256x128xf32>
    %13 = arith.addf %10, %12 : vector<256x128xf32>
    %cst_11 = arith.constant 0.000000e+00 : f32
    %14 = vector.broadcast %cst_11 : f32 to vector<256x128xf32>
    %15 = arith.maximumf %13, %14 : vector<256x128xf32>
    %16 = arith.truncf %15 : vector<256x128xf32> to vector<256x128xbf16>
    %c0_12 = arith.constant 0 : index
    %c0_13 = arith.constant 0 : index
    %17 = vector.load %arg6[%c0_12, %c0_13] : memref<128x64xbf16, #tpu.memory_space<vmem>>, vector<128x64xbf16>
    %cst_14 = arith.constant dense<0.000000e+00> : vector<256x64xf32>
    %18 = tpu.matmul %16, %17, %cst_14 {dimension_numbers = #tpu.dot_dimension_numbers<[1], [0], [0], [1], [0, 0, 1, 1], [], []>} : vector<256x128xbf16>, vector<128x64xbf16>, vector<256x64xf32> -> vector<256x64xf32>
    %c0_15 = arith.constant 0 : index
    %c0_16 = arith.constant 0 : index
    %19 = vector.load %arg7[%c0_15, %c0_16] : memref<1x64xf32, #tpu.memory_space<vmem>>, vector<1x64xf32>
    %20 = vector.broadcast %19 : vector<1x64xf32> to vector<256x64xf32>
    %21 = arith.addf %18, %20 : vector<256x64xf32>
    %cst_17 = arith.constant 0.000000e+00 : f32
    %22 = vector.broadcast %cst_17 : f32 to vector<256x64xf32>
    %23 = arith.maximumf %21, %22 : vector<256x64xf32>
    %24 = arith.truncf %23 : vector<256x64xf32> to vector<256x64xbf16>
    %c0_18 = arith.constant 0 : index
    %c0_19 = arith.constant 0 : index
    %25 = vector.load %arg8[%c0_18, %c0_19] : memref<64x32xbf16, #tpu.memory_space<vmem>>, vector<64x32xbf16>
    %cst_20 = arith.constant dense<0.000000e+00> : vector<256x32xf32>
    %26 = tpu.matmul %24, %25, %cst_20 {dimension_numbers = #tpu.dot_dimension_numbers<[1], [0], [0], [1], [0, 0, 1, 1], [], []>} : vector<256x64xbf16>, vector<64x32xbf16>, vector<256x32xf32> -> vector<256x32xf32>
    %c0_21 = arith.constant 0 : index
    %c0_22 = arith.constant 0 : index
    %27 = vector.load %arg9[%c0_21, %c0_22] : memref<1x32xf32, #tpu.memory_space<vmem>>, vector<1x32xf32>
    %28 = vector.broadcast %27 : vector<1x32xf32> to vector<256x32xf32>
    %29 = arith.addf %26, %28 : vector<256x32xf32>
    %cst_23 = arith.constant 0.000000e+00 : f32
    %30 = vector.broadcast %cst_23 : f32 to vector<256x32xf32>
    %31 = arith.maximumf %29, %30 : vector<256x32xf32>
    %32 = arith.truncf %31 : vector<256x32xf32> to vector<256x32xbf16>
    %c0_24 = arith.constant 0 : index
    %c0_25 = arith.constant 0 : index
    %33 = vector.load %arg10[%c0_24, %c0_25] : memref<32x128xbf16, #tpu.memory_space<vmem>>, vector<32x128xbf16>
    %cst_26 = arith.constant dense<0.000000e+00> : vector<256x128xf32>
    %34 = tpu.matmul %32, %33, %cst_26 {dimension_numbers = #tpu.dot_dimension_numbers<[1], [0], [0], [1], [0, 0, 1, 1], [], []>} : vector<256x32xbf16>, vector<32x128xbf16>, vector<256x128xf32> -> vector<256x128xf32>
    %c0_27 = arith.constant 0 : index
    %c0_28 = arith.constant 0 : index
    %35 = vector.load %arg11[%c0_27, %c0_28] : memref<1x128xf32, #tpu.memory_space<vmem>>, vector<1x128xf32>
    %36 = vector.broadcast %35 : vector<1x128xf32> to vector<256x128xf32>
    %37 = arith.addf %34, %36 : vector<256x128xf32>
    %c0_29 = arith.constant 0 : index
    %c0_30 = arith.constant 0 : index
    %38 = vector.load %arg12[%c0_29, %c0_30] : memref<256x128xf32, #tpu.memory_space<vmem>>, vector<256x128xf32>
    tpu.vector_store %arg12[%c0_29, %c0_30], %37 {strides = array<i32>} : memref<256x128xf32, #tpu.memory_space<vmem>>, vector<256x128xf32>,
    return
  }
  func.func @transform_0(%arg0: i32) -> (i32, i32) {
    %c0_i32 = arith.constant 0 : i32
    %c0_i32_0 = arith.constant 0 : i32
    return %arg0, %c0_i32 : i32, i32
  }
  func.func @transform_1(%arg0: i32) -> (i32, i32) {
    %c0_i32 = arith.constant 0 : i32
    %c0_i32_0 = arith.constant 0 : i32
    %c0_i32_1 = arith.constant 0 : i32
    return %c0_i32, %c0_i32_0 : i32, i32
  }
  func.func @transform_2(%arg0: i32) -> (i32, i32) {
    %c0_i32 = arith.constant 0 : i32
    %c0_i32_0 = arith.constant 0 : i32
    %c0_i32_1 = arith.constant 0 : i32
    return %c0_i32, %c0_i32_0 : i32, i32
  }
  func.func @transform_3(%arg0: i32) -> (i32, i32) {
    %c0_i32 = arith.constant 0 : i32
    %c0_i32_0 = arith.constant 0 : i32
    %c0_i32_1 = arith.constant 0 : i32
    return %c0_i32, %c0_i32_0 : i32, i32
  }
  func.func @transform_4(%arg0: i32) -> (i32, i32) {
    %c0_i32 = arith.constant 0 : i32
    %c0_i32_0 = arith.constant 0 : i32
    %c0_i32_1 = arith.constant 0 : i32
    return %c0_i32, %c0_i32_0 : i32, i32
  }
  func.func @transform_5(%arg0: i32) -> (i32, i32) {
    %c0_i32 = arith.constant 0 : i32
    %c0_i32_0 = arith.constant 0 : i32
    %c0_i32_1 = arith.constant 0 : i32
    return %c0_i32, %c0_i32_0 : i32, i32
  }
  func.func @transform_6(%arg0: i32) -> (i32, i32) {
    %c0_i32 = arith.constant 0 : i32
    %c0_i32_0 = arith.constant 0 : i32
    %c0_i32_1 = arith.constant 0 : i32
    return %c0_i32, %c0_i32_0 : i32, i32
  }
  func.func @transform_7(%arg0: i32) -> (i32, i32) {
    %c0_i32 = arith.constant 0 : i32
    %c0_i32_0 = arith.constant 0 : i32
    %c0_i32_1 = arith.constant 0 : i32
    return %c0_i32, %c0_i32_0 : i32, i32
  }
  func.func @transform_8(%arg0: i32) -> (i32, i32) {
    %c0_i32 = arith.constant 0 : i32
    %c0_i32_0 = arith.constant 0 : i32
    %c0_i32_1 = arith.constant 0 : i32
    return %c0_i32, %c0_i32_0 : i32, i32
  }
  func.func @transform_9(%arg0: i32) -> (i32, i32) {
    %c0_i32 = arith.constant 0 : i32
    %c0_i32_0 = arith.constant 0 : i32
    %c0_i32_1 = arith.constant 0 : i32
    return %c0_i32, %c0_i32_0 : i32, i32
  }
  func.func @transform_10(%arg0: i32) -> (i32, i32) {
    %c0_i32 = arith.constant 0 : i32
    %c0_i32_0 = arith.constant 0 : i32
    %c0_i32_1 = arith.constant 0 : i32
    return %c0_i32, %c0_i32_0 : i32, i32
  }
  func.func @transform_11(%arg0: i32) -> (i32, i32) {
    %c0_i32 = arith.constant 0 : i32
    %c0_i32_0 = arith.constant 0 : i32
    return %arg0, %c0_i32 : i32, i32
  }
}

</mosaic_0001>

<llo_original>
// kernel: generator_forward.1
$region0: #{generator_forward.1}
  #allocation0 [shape = 'u32[]', space=smem, size = 0x4, offset = 0x4, fixed_abs, tag = 'smem constant byte address 0x4 - core index']
  #allocation1 [shape = 'u32[144,128]{1,0:T(1,128)}', space=vmem, size = 0x12000, scoped, tag = 'internal scratch']
  %s0 = inlined_call_operand.vmem [shape: bf16[256,32], index: 0, kind: input, shape index: {}]
  %s1 = inlined_call_operand.vmem [shape: bf16[32,256], index: 1, kind: input, shape index: {}]
  %s2 = inlined_call_operand.vmem [shape: f32[1,256], index: 2, kind: input, shape index: {}]
  %s3 = inlined_call_operand.vmem [shape: bf16[256,128], index: 3, kind: input, shape index: {}]
  %s4 = inlined_call_operand.vmem [shape: f32[1,128], index: 4, kind: input, shape index: {}]
  %s5 = inlined_call_operand.vmem [shape: bf16[128,64], index: 5, kind: input, shape index: {}]
  %s6 = inlined_call_operand.vmem [shape: f32[1,64], index: 6, kind: input, shape index: {}]
  %s7 = inlined_call_operand.vmem [shape: bf16[64,32], index: 7, kind: input, shape index: {}]
  %s8 = inlined_call_operand.vmem [shape: f32[1,32], index: 8, kind: input, shape index: {}]
  %s9 = inlined_call_operand.vmem [shape: bf16[32,128], index: 9, kind: input, shape index: {}]
  %s10 = inlined_call_operand.vmem [shape: f32[1,128], index: 10, kind: input, shape index: {}]
  %s11 = inlined_call_operand.vmem [shape: f32[256,128], index: 11, kind: output, shape index: {}]
  %s12 = sld [smem:[#allocation0]]
  $region54: #{generator_forward.1} parent=0
    _
  %s14 = ssub.s32 1, %s12
  %s15 = scalar_select 0, %s14, %s12
  // Predicated region
  $region2: #{generator_forward.1} parent=0 // pred_check
    _
  $region3: #{generator_forward.1} parent=0 // pred_check_branch
    %17 = sbr.rel (0) target = $region5
  $region4: #{generator_forward.1} parent=0 // pred_region
    _
  $region5: #{generator_forward.1} parent=0 // pred_fallthru
    _
  // Predicated region
  $region6: #{generator_forward.1} parent=0 // pred_check
    _
  $region7: #{generator_forward.1} parent=0 // pred_check_branch
    %19 = sbr.rel (0) target = $region9
  $region8: #{generator_forward.1} parent=0 // pred_region
    _
  $region9: #{generator_forward.1} parent=0 // pred_fallthru
    _
  // Predicated region
  $region10: #{generator_forward.1} parent=0 // pred_check
    _
  $region11: #{generator_forward.1} parent=0 // pred_check_branch
    %21 = sbr.rel (0) target = $region13
  $region12: #{generator_forward.1} parent=0 // pred_region
    _
  $region13: #{generator_forward.1} parent=0 // pred_fallthru
    _
  // Predicated region
  $region14: #{generator_forward.1} parent=0 // pred_check
    _
  $region15: #{generator_forward.1} parent=0 // pred_check_branch
    %23 = sbr.rel (0) target = $region17
  $region16: #{generator_forward.1} parent=0 // pred_region
    _
  $region17: #{generator_forward.1} parent=0 // pred_fallthru
    _
  // Predicated region
  $region18: #{generator_forward.1} parent=0 // pred_check
    _
  $region19: #{generator_forward.1} parent=0 // pred_check_branch
    %25 = sbr.rel (0) target = $region21
  $region20: #{generator_forward.1} parent=0 // pred_region
    _
  $region21: #{generator_forward.1} parent=0 // pred_fallthru
    _
  // Predicated region
  $region22: #{generator_forward.1} parent=0 // pred_check
    _
  $region23: #{generator_forward.1} parent=0 // pred_check_branch
    %27 = sbr.rel (0) target = $region25
  $region24: #{generator_forward.1} parent=0 // pred_region
    _
  $region25: #{generator_forward.1} parent=0 // pred_fallthru
    _
  // Predicated region
  $region26: #{generator_forward.1} parent=0 // pred_check
    _
  $region27: #{generator_forward.1} parent=0 // pred_check_branch
    %29 = sbr.rel (0) target = $region29
  $region28: #{generator_forward.1} parent=0 // pred_region
    _
  $region29: #{generator_forward.1} parent=0 // pred_fallthru
    _
  // Predicated region
  $region30: #{generator_forward.1} parent=0 // pred_check
    _
  $region31: #{generator_forward.1} parent=0 // pred_check_branch
    %31 = sbr.rel (0) target = $region33
  $region32: #{generator_forward.1} parent=0 // pred_region
    _
  $region33: #{generator_forward.1} parent=0 // pred_fallthru
    _
  // Predicated region
  $region34: #{generator_forward.1} parent=0 // pred_check
    _
  $region35: #{generator_forward.1} parent=0 // pred_check_branch
    %33 = sbr.rel (0) target = $region37
  $region36: #{generator_forward.1} parent=0 // pred_region
    _
  $region37: #{generator_forward.1} parent=0 // pred_fallthru
    _
  // Predicated region
  $region38: #{generator_forward.1} parent=0 // pred_check
    _
  $region39: #{generator_forward.1} parent=0 // pred_check_branch
    %35 = sbr.rel (0) target = $region41
  $region40: #{generator_forward.1} parent=0 // pred_region
    _
  $region41: #{generator_forward.1} parent=0 // pred_fallthru
    _
  // Predicated region
  $region42: #{generator_forward.1} parent=0 // pred_check
    _
  $region43: #{generator_forward.1} parent=0 // pred_check_branch
    %37 = sbr.rel (0) target = $region45
  $region44: #{generator_forward.1} parent=0 // pred_region
    _
  $region45: #{generator_forward.1} parent=0 // pred_fallthru
    _
  %v39 = vld [vmem:[%s0] sm:$0xf]
  %v40 = vld [vmem:[%s0 + $0x4] sm:$0xf]
  %v41 = vld [vmem:[%s0 + $0x8] sm:$0xf]
  %v42 = vld [vmem:[%s0 + $0xc] sm:$0xf]
  %v43 = vld [vmem:[%s0 + $0x10] sm:$0xf]
  %v44 = vld [vmem:[%s0 + $0x14] sm:$0xf]
  %v45 = vld [vmem:[%s0 + $0x18] sm:$0xf]
  %v46 = vld [vmem:[%s0 + $0x1c] sm:$0xf]
  %v47 = vld [vmem:[%s0 + $0x20] sm:$0xf]
  %v48 = vld [vmem:[%s0 + $0x24] sm:$0xf]
  %v49 = vld [vmem:[%s0 + $0x28] sm:$0xf]
  %v50 = vld [vmem:[%s0 + $0x2c] sm:$0xf]
  %v51 = vld [vmem:[%s0 + $0x30] sm:$0xf]
  %v52 = vld [vmem:[%s0 + $0x34] sm:$0xf]
  %v53 = vld [vmem:[%s0 + $0x38] sm:$0xf]
  %v54 = vld [vmem:[%s0 + $0x3c] sm:$0xf]
  %v55 = vld [vmem:[%s0 + $0x40] sm:$0xf]
  %v56 = vld [vmem:[%s0 + $0x44] sm:$0xf]
  %v57 = vld [vmem:[%s0 + $0x48] sm:$0xf]
  %v58 = vld [vmem:[%s0 + $0x4c] sm:$0xf]
  %v59 = vld [vmem:[%s0 + $0x50] sm:$0xf]
  %v60 = vld [vmem:[%s0 + $0x54] sm:$0xf]
  %v61 = vld [vmem:[%s0 + $0x58] sm:$0xf]
  %v62 = vld [vmem:[%s0 + $0x5c] sm:$0xf]
  %v63 = vld [vmem:[%s0 + $0x60] sm:$0xf]
  %v64 = vld [vmem:[%s0 + $0x64] sm:$0xf]
  %v65 = vld [vmem:[%s0 + $0x68] sm:$0xf]
  %v66 = vld [vmem:[%s0 + $0x6c] sm:$0xf]
  %v67 = vld [vmem:[%s0 + $0x70] sm:$0xf]
  %v68 = vld [vmem:[%s0 + $0x74] sm:$0xf]
  %v69 = vld [vmem:[%s0 + $0x78] sm:$0xf]
  %v70 = vld [vmem:[%s0 + $0x7c] sm:$0xf]
  %v71 = vld [vmem:[%s1] sm:$0xff]
  %v72 = vld [vmem:[%s1 + $0x8] sm:$0xff]
  %v73 = vld [vmem:[%s1 + $0x10] sm:$0xff]
  %v74 = vld [vmem:[%s1 + $0x18] sm:$0xff]
  %v75 = vld [vmem:[%s2] sm:$0x3]
  %v77 = vlaneseq
  %v78 = vshrl.u32 %v77, 7
  %v79 = vsub.s32 0, %v78
  %v80 = vrot.slane %v75, %v79
  %v81 = vlaneseq
  %v82 = vshrl.u32 %v81, 7
  %v83 = vsub.s32 1, %v82
  %v84 = vrot.slane %v75, %v83
  %v119 = vunpack.c.l.b16 %v39
  %v120 = vunpack.c.l.b16 %v40
  %v121 = vunpack.c.l.b16 %v41
  %v122 = vunpack.c.l.b16 %v42
  %v123 = vunpack.c.l.b16 %v43
  %v124 = vunpack.c.l.b16 %v44
  %v125 = vunpack.c.l.b16 %v45
  %v126 = vunpack.c.l.b16 %v46
  %v127 = vunpack.c.l.b16 %v47
  %v128 = vunpack.c.l.b16 %v48
  %v129 = vunpack.c.l.b16 %v49
  %v130 = vunpack.c.l.b16 %v50
  %v131 = vunpack.c.l.b16 %v51
  %v132 = vunpack.c.l.b16 %v52
  %v133 = vunpack.c.l.b16 %v53
  %v134 = vunpack.c.l.b16 %v54
  %v135 = vunpack.c.l.b16 %v55
  %v136 = vunpack.c.l.b16 %v56
  %v137 = vunpack.c.l.b16 %v57
  %v138 = vunpack.c.l.b16 %v58
  %v139 = vunpack.c.l.b16 %v59
  %v140 = vunpack.c.l.b16 %v60
  %v141 = vunpack.c.l.b16 %v61
  %v142 = vunpack.c.l.b16 %v62
  %v143 = vunpack.c.l.b16 %v63
  %v144 = vunpack.c.l.b16 %v64
  %v145 = vunpack.c.l.b16 %v65
  %v146 = vunpack.c.l.b16 %v66
  %v147 = vunpack.c.l.b16 %v67
  %v148 = vunpack.c.l.b16 %v68
  %v149 = vunpack.c.l.b16 %v69
  %v150 = vunpack.c.l.b16 %v70
  %v151 = vpack.c.b16 %v120, %v119
  %v152 = vpack.c.b16 %v122, %v121
  %v153 = vpack.c.b16 %v124, %v123
  %v154 = vpack.c.b16 %v126, %v125
  %v155 = vpack.c.b16 %v128, %v127
  %v156 = vpack.c.b16 %v130, %v129
  %v157 = vpack.c.b16 %v132, %v131
  %v158 = vpack.c.b16 %v134, %v133
  %v159 = vpack.c.b16 %v136, %v135
  %v160 = vpack.c.b16 %v138, %v137
  %v161 = vpack.c.b16 %v140, %v139
  %v162 = vpack.c.b16 %v142, %v141
  %v163 = vpack.c.b16 %v144, %v143
  %v164 = vpack.c.b16 %v146, %v145
  %v165 = vpack.c.b16 %v148, %v147
  %v166 = vpack.c.b16 %v150, %v149
  %v171 = vunpack.c.l.b16 %v71
  %v172 = vunpack.c.h.b16 %v71
  %v173 = vunpack.c.l.b16 %v72
  %v174 = vunpack.c.h.b16 %v72
  %v175 = vunpack.c.l.b16 %v73
  %v176 = vunpack.c.h.b16 %v73
  %v177 = vunpack.c.l.b16 %v74
  %v178 = vunpack.c.h.b16 %v74
  %v179 = vpack.c.b16 %v173, %v171
  %v180 = vpack.c.b16 %v174, %v172
  %v181 = vpack.c.b16 %v177, %v175
  %v182 = vpack.c.b16 %v178, %v176
  %vm187 = vcmask 261120
  %v189 = vsel %vm187, %v151, 0
  %v192 = vsel %vm187, %v152, 0
  %v195 = vsel %vm187, %v153, 0
  %v198 = vsel %vm187, %v154, 0
  %v201 = vsel %vm187, %v155, 0
  %v204 = vsel %vm187, %v156, 0
  %v207 = vsel %vm187, %v157, 0
  %v210 = vsel %vm187, %v158, 0
  %v213 = vsel %vm187, %v159, 0
  %v216 = vsel %vm187, %v160, 0
  %v219 = vsel %vm187, %v161, 0
  %v222 = vsel %vm187, %v162, 0
  %v225 = vsel %vm187, %v163, 0
  %v228 = vsel %vm187, %v164, 0
  %v231 = vsel %vm187, %v165, 0
  %v234 = vsel %vm187, %v166, 0
  %236 = vmatprep.subr.bf16.mxu0 0
  %237 = vmatpush1.bf16.msra.mxu0 0
  %238 = vmatprep.subr.bf16.mxu0 0
  %239 = vmatpush1.bf16.msra.mxu0 0
  %240 = vmatprep.subr.bf16.mxu0 0
  %241 = vmatpush1.bf16.msra.mxu0 0
  %242 = vmatprep.subr.bf16.mxu0 0
  %243 = vmatpush1.bf16.msra.mxu0 0
  %244 = vmatprep.subr.bf16.mxu0 0
  %245 = vmatpush1.bf16.msra.mxu0 0
  %246 = vmatprep.subr.bf16.mxu0 0
  %247 = vmatpush1.bf16.msra.mxu0 0
  %248 = vmatprep.subr.bf16.mxu0 %v182
  %249 = vmatpush1.bf16.msra.mxu0 %v181
  %250 = vmatprep.subr.bf16.mxu0 %v180
  %251 = vmatpush1.bf16.msra.mxu0 %v179
  %252 = vmatprep.subr.bf16.mxu0 0
  %253 = vmatpush2.bf16.msra.mxu0 0
  %254 = vmatprep.subr.bf16.mxu0 0
  %255 = vmatpush2.bf16.msra.mxu0 0
  %256 = vmatprep.subr.bf16.mxu0 0
  %257 = vmatpush2.bf16.msra.mxu0 0
  %258 = vmatprep.subr.bf16.mxu0 0
  %259 = vmatpush2.bf16.msra.mxu0 0
  %260 = vmatprep.subr.bf16.mxu0 0
  %261 = vmatpush2.bf16.msra.mxu0 0
  %262 = vmatprep.subr.bf16.mxu0 0
  %263 = vmatpush2.bf16.msra.mxu0 0
  %264 = vmatprep.subr.bf16.mxu0 0
  %265 = vmatpush2.bf16.msra.mxu0 0
  %266 = vmatprep.subr.bf16.mxu0 0
  %267 = vmatpush2.bf16.msra.mxu0 0
  %268 = vmatprep.mubr.bf16.mxu0 0
  %269 = vmatmul.mubr.bf16.gmra.mxu0 %v189
  %v270 = vpop.f32.mrf.mxu0
  %v271 = vadd.f32 %v80, %v270
  %v272 = vpop.f32.mrf.mxu0
  %v273 = vadd.f32 %v84, %v272
  %v274 = vpop.f32.mrf.mxu0
  %v275 = vadd.f32 %v80, %v274
  %v276 = vpop.f32.mrf.mxu0
  %v277 = vadd.f32 %v84, %v276
  %278 = vmatprep.mubr.bf16.mxu0 0
  %279 = vmatmul.mubr.bf16.gmra.mxu0 %v192
  %v280 = vpop.f32.mrf.mxu0
  %v281 = vadd.f32 %v80, %v280
  %v282 = vpop.f32.mrf.mxu0
  %v283 = vadd.f32 %v84, %v282
  %v284 = vpop.f32.mrf.mxu0
  %v285 = vadd.f32 %v80, %v284
  %v286 = vpop.f32.mrf.mxu0
  %v287 = vadd.f32 %v84, %v286
  %288 = vmatprep.mubr.bf16.mxu0 0
  %289 = vmatmul.mubr.bf16.gmra.mxu0 %v195
  %v290 = vpop.f32.mrf.mxu0
  %v291 = vadd.f32 %v80, %v290
  %v292 = vpop.f32.mrf.mxu0
  %v293 = vadd.f32 %v84, %v292
  %v294 = vpop.f32.mrf.mxu0
  %v295 = vadd.f32 %v80, %v294
  %v296 = vpop.f32.mrf.mxu0
  %v297 = vadd.f32 %v84, %v296
  %298 = vmatprep.mubr.bf16.mxu0 0
  %299 = vmatmul.mubr.bf16.gmra.mxu0 %v198
  %v300 = vpop.f32.mrf.mxu0
  %v301 = vadd.f32 %v80, %v300
  %v302 = vpop.f32.mrf.mxu0
  %v303 = vadd.f32 %v84, %v302
  %v304 = vpop.f32.mrf.mxu0
  %v305 = vadd.f32 %v80, %v304
  %v306 = vpop.f32.mrf.mxu0
  %v307 = vadd.f32 %v84, %v306
  %308 = vmatprep.mubr.bf16.mxu0 0
  %309 = vmatmul.mubr.bf16.gmra.mxu0 %v201
  %v310 = vpop.f32.mrf.mxu0
  %v311 = vadd.f32 %v80, %v310
  %v312 = vpop.f32.mrf.mxu0
  %v313 = vadd.f32 %v84, %v312
  %v314 = vpop.f32.mrf.mxu0
  %v315 = vadd.f32 %v80, %v314
  %v316 = vpop.f32.mrf.mxu0
  %v317 = vadd.f32 %v84, %v316
  %318 = vmatprep.mubr.bf16.mxu0 0
  %319 = vmatmul.mubr.bf16.gmra.mxu0 %v204
  %v320 = vpop.f32.mrf.mxu0
  %v321 = vadd.f32 %v80, %v320
  %v322 = vpop.f32.mrf.mxu0
  %v323 = vadd.f32 %v84, %v322
  %v324 = vpop.f32.mrf.mxu0
  %v325 = vadd.f32 %v80, %v324
  %v326 = vpop.f32.mrf.mxu0
  %v327 = vadd.f32 %v84, %v326
  %328 = vmatprep.mubr.bf16.mxu0 0
  %329 = vmatmul.mubr.bf16.gmra.mxu0 %v207
  %v330 = vpop.f32.mrf.mxu0
  %v331 = vadd.f32 %v80, %v330
  %v332 = vpop.f32.mrf.mxu0
  %v333 = vadd.f32 %v84, %v332
  %v334 = vpop.f32.mrf.mxu0
  %v335 = vadd.f32 %v80, %v334
  %v336 = vpop.f32.mrf.mxu0
  %v337 = vadd.f32 %v84, %v336
  %338 = vmatprep.mubr.bf16.mxu0 0
  %339 = vmatmul.mubr.bf16.gmra.mxu0 %v210
  %v340 = vpop.f32.mrf.mxu0
  %v341 = vadd.f32 %v80, %v340
  %v342 = vpop.f32.mrf.mxu0
  %v343 = vadd.f32 %v84, %v342
  %v344 = vpop.f32.mrf.mxu0
  %v345 = vadd.f32 %v80, %v344
  %v346 = vpop.f32.mrf.mxu0
  %v347 = vadd.f32 %v84, %v346
  %348 = vmatprep.mubr.bf16.mxu0 0
  %349 = vmatmul.mubr.bf16.gmra.mxu0 %v213
  %v350 = vpop.f32.mrf.mxu0
  %v351 = vadd.f32 %v80, %v350
  %v352 = vpop.f32.mrf.mxu0
  %v353 = vadd.f32 %v84, %v352
  %v354 = vpop.f32.mrf.mxu0
  %v355 = vadd.f32 %v80, %v354
  %v356 = vpop.f32.mrf.mxu0
  %v357 = vadd.f32 %v84, %v356
  %358 = vmatprep.mubr.bf16.mxu0 0
  %359 = vmatmul.mubr.bf16.gmra.mxu0 %v216
  %v360 = vpop.f32.mrf.mxu0
  %v361 = vadd.f32 %v80, %v360
  %v362 = vpop.f32.mrf.mxu0
  %v363 = vadd.f32 %v84, %v362
  %v364 = vpop.f32.mrf.mxu0
  %v365 = vadd.f32 %v80, %v364
  %v366 = vpop.f32.mrf.mxu0
  %v367 = vadd.f32 %v84, %v366
  %368 = vmatprep.mubr.bf16.mxu0 0
  %369 = vmatmul.mubr.bf16.gmra.mxu0 %v219
  %v370 = vpop.f32.mrf.mxu0
  %v371 = vadd.f32 %v80, %v370
  %v372 = vpop.f32.mrf.mxu0
  %v373 = vadd.f32 %v84, %v372
  %v374 = vpop.f32.mrf.mxu0
  %v375 = vadd.f32 %v80, %v374
  %v376 = vpop.f32.mrf.mxu0
  %v377 = vadd.f32 %v84, %v376
  %378 = vmatprep.mubr.bf16.mxu0 0
  %379 = vmatmul.mubr.bf16.gmra.mxu0 %v222
  %v380 = vpop.f32.mrf.mxu0
  %v381 = vadd.f32 %v80, %v380
  %v382 = vpop.f32.mrf.mxu0
  %v383 = vadd.f32 %v84, %v382
  %v384 = vpop.f32.mrf.mxu0
  %v385 = vadd.f32 %v80, %v384
  %v386 = vpop.f32.mrf.mxu0
  %v387 = vadd.f32 %v84, %v386
  %388 = vmatprep.mubr.bf16.mxu0 0
  %389 = vmatmul.mubr.bf16.gmra.mxu0 %v225
  %v390 = vpop.f32.mrf.mxu0
  %v391 = vadd.f32 %v80, %v390
  %v392 = vpop.f32.mrf.mxu0
  %v393 = vadd.f32 %v84, %v392
  %v394 = vpop.f32.mrf.mxu0
  %v395 = vadd.f32 %v80, %v394
  %v396 = vpop.f32.mrf.mxu0
  %v397 = vadd.f32 %v84, %v396
  %398 = vmatprep.mubr.bf16.mxu0 0
  %399 = vmatmul.mubr.bf16.gmra.mxu0 %v228
  %v400 = vpop.f32.mrf.mxu0
  %v401 = vadd.f32 %v80, %v400
  %v402 = vpop.f32.mrf.mxu0
  %v403 = vadd.f32 %v84, %v402
  %v404 = vpop.f32.mrf.mxu0
  %v405 = vadd.f32 %v80, %v404
  %v406 = vpop.f32.mrf.mxu0
  %v407 = vadd.f32 %v84, %v406
  %408 = vmatprep.mubr.bf16.mxu0 0
  %409 = vmatmul.mubr.bf16.gmra.mxu0 %v231
  %v410 = vpop.f32.mrf.mxu0
  %v411 = vadd.f32 %v80, %v410
  %v412 = vpop.f32.mrf.mxu0
  %v413 = vadd.f32 %v84, %v412
  %v414 = vpop.f32.mrf.mxu0
  %v415 = vadd.f32 %v80, %v414
  %v416 = vpop.f32.mrf.mxu0
  %v417 = vadd.f32 %v84, %v416
  %418 = vmatprep.mubr.bf16.mxu0 0
  %419 = vmatmul.mubr.bf16.gmra.mxu0 %v234
  %v420 = vpop.f32.mrf.mxu0
  %v421 = vadd.f32 %v80, %v420
  %v422 = vpop.f32.mrf.mxu0
  %v423 = vadd.f32 %v84, %v422
  %v424 = vpop.f32.mrf.mxu0
  %v425 = vadd.f32 %v80, %v424
  %v426 = vpop.f32.mrf.mxu0
  %v427 = vadd.f32 %v84, %v426
  %428 = vdwg.mxu0
  %v429 = vmax.f32 %v271, 0.0
  %v430 = vmax.f32 %v273, 0.0
  %v431 = vmax.f32 %v275, 0.0
  %v432 = vmax.f32 %v277, 0.0
  %v433 = vmax.f32 %v281, 0.0
  %v434 = vmax.f32 %v283, 0.0
  %v435 = vmax.f32 %v285, 0.0
  %v436 = vmax.f32 %v287, 0.0
  %v437 = vmax.f32 %v291, 0.0
  %v438 = vmax.f32 %v293, 0.0
  %v439 = vmax.f32 %v295, 0.0
  %v440 = vmax.f32 %v297, 0.0
  %v441 = vmax.f32 %v301, 0.0
  %v442 = vmax.f32 %v303, 0.0
  %v443 = vmax.f32 %v305, 0.0
  %v444 = vmax.f32 %v307, 0.0
  %v445 = vmax.f32 %v311, 0.0
  %v446 = vmax.f32 %v313, 0.0
  %v447 = vmax.f32 %v315, 0.0
  %v448 = vmax.f32 %v317, 0.0
  %v449 = vmax.f32 %v321, 0.0
  %v450 = vmax.f32 %v323, 0.0
  %v451 = vmax.f32 %v325, 0.0
  %v452 = vmax.f32 %v327, 0.0
  %v453 = vmax.f32 %v331, 0.0
  %v454 = vmax.f32 %v333, 0.0
  %v455 = vmax.f32 %v335, 0.0
  %v456 = vmax.f32 %v337, 0.0
  %v457 = vmax.f32 %v341, 0.0
  %v458 = vmax.f32 %v343, 0.0
  %v459 = vmax.f32 %v345, 0.0
  %v460 = vmax.f32 %v347, 0.0
  %v461 = vmax.f32 %v351, 0.0
  %v462 = vmax.f32 %v353, 0.0
  %v463 = vmax.f32 %v355, 0.0
  %v464 = vmax.f32 %v357, 0.0
  %v465 = vmax.f32 %v361, 0.0
  %v466 = vmax.f32 %v363, 0.0
  %v467 = vmax.f32 %v365, 0.0
  %v468 = vmax.f32 %v367, 0.0
  %v469 = vmax.f32 %v371, 0.0
  %v470 = vmax.f32 %v373, 0.0
  %v471 = vmax.f32 %v375, 0.0
  %v472 = vmax.f32 %v377, 0.0
  %v473 = vmax.f32 %v381, 0.0
  %v474 = vmax.f32 %v383, 0.0
  %v475 = vmax.f32 %v385, 0.0
  %v476 = vmax.f32 %v387, 0.0
  %v477 = vmax.f32 %v391, 0.0
  %v478 = vmax.f32 %v393, 0.0
  %v479 = vmax.f32 %v395, 0.0
  %v480 = vmax.f32 %v397, 0.0
  %v481 = vmax.f32 %v401, 0.0
  %v482 = vmax.f32 %v403, 0.0
  %v483 = vmax.f32 %v405, 0.0
  %v484 = vmax.f32 %v407, 0.0
  %v485 = vmax.f32 %v411, 0.0
  %v486 = vmax.f32 %v413, 0.0
  %v487 = vmax.f32 %v415, 0.0
  %v488 = vmax.f32 %v417, 0.0
  %v489 = vmax.f32 %v421, 0.0
  %v490 = vmax.f32 %v423, 0.0
  %v491 = vmax.f32 %v425, 0.0
  %v492 = vmax.f32 %v427, 0.0
  %v493 = vpack.c.bf16 %v431, %v429
  %v494 = vpack.c.bf16 %v432, %v430
  %v495 = vpack.c.bf16 %v435, %v433
  %v496 = vpack.c.bf16 %v436, %v434
  %v497 = vpack.c.bf16 %v439, %v437
  %v498 = vpack.c.bf16 %v440, %v438
  %v499 = vpack.c.bf16 %v443, %v441
  %v500 = vpack.c.bf16 %v444, %v442
  %v501 = vpack.c.bf16 %v447, %v445
  %v502 = vpack.c.bf16 %v448, %v446
  %v503 = vpack.c.bf16 %v451, %v449
  %v504 = vpack.c.bf16 %v452, %v450
  %v505 = vpack.c.bf16 %v455, %v453
  %v506 = vpack.c.bf16 %v456, %v454
  %v507 = vpack.c.bf16 %v459, %v457
  %v508 = vpack.c.bf16 %v460, %v458
  %v509 = vpack.c.bf16 %v463, %v461
  %v510 = vpack.c.bf16 %v464, %v462
  %v511 = vpack.c.bf16 %v467, %v465
  %v512 = vpack.c.bf16 %v468, %v466
  %v513 = vpack.c.bf16 %v471, %v469
  %v514 = vpack.c.bf16 %v472, %v470
  %v515 = vpack.c.bf16 %v475, %v473
  %v516 = vpack.c.bf16 %v476, %v474
  %v517 = vpack.c.bf16 %v479, %v477
  %v518 = vpack.c.bf16 %v480, %v478
  %v519 = vpack.c.bf16 %v483, %v481
  %v520 = vpack.c.bf16 %v484, %v482
  %v521 = vpack.c.bf16 %v487, %v485
  %v522 = vpack.c.bf16 %v488, %v486
  %v523 = vpack.c.bf16 %v491, %v489
  %v524 = vpack.c.bf16 %v492, %v490
  %v525 = vld [vmem:[%s3] sm:$0xf]
  %v526 = vld [vmem:[%s3 + $0x4] sm:$0xf]
  %v527 = vld [vmem:[%s3 + $0x8] sm:$0xf]
  %v528 = vld [vmem:[%s3 + $0xc] sm:$0xf]
  %v529 = vld [vmem:[%s3 + $0x10] sm:$0xf]
  %v530 = vld [vmem:[%s3 + $0x14] sm:$0xf]
  %v531 = vld [vmem:[%s3 + $0x18] sm:$0xf]
  %v532 = vld [vmem:[%s3 + $0x1c] sm:$0xf]
  %v533 = vld [vmem:[%s3 + $0x20] sm:$0xf]
  %v534 = vld [vmem:[%s3 + $0x24] sm:$0xf]
  %v535 = vld [vmem:[%s3 + $0x28] sm:$0xf]
  %v536 = vld [vmem:[%s3 + $0x2c] sm:$0xf]
  %v537 = vld [vmem:[%s3 + $0x30] sm:$0xf]
  %v538 = vld [vmem:[%s3 + $0x34] sm:$0xf]
  %v539 = vld [vmem:[%s3 + $0x38] sm:$0xf]
  %v540 = vld [vmem:[%s3 + $0x3c] sm:$0xf]
  %v541 = vld [vmem:[%s3 + $0x40] sm:$0xf]
  %v542 = vld [vmem:[%s3 + $0x44] sm:$0xf]
  %v543 = vld [vmem:[%s3 + $0x48] sm:$0xf]
  %v544 = vld [vmem:[%s3 + $0x4c] sm:$0xf]
  %v545 = vld [vmem:[%s3 + $0x50] sm:$0xf]
  %v546 = vld [vmem:[%s3 + $0x54] sm:$0xf]
  %v547 = vld [vmem:[%s3 + $0x58] sm:$0xf]
  %v548 = vld [vmem:[%s3 + $0x5c] sm:$0xf]
  %v549 = vld [vmem:[%s3 + $0x60] sm:$0xf]
  %v550 = vld [vmem:[%s3 + $0x64] sm:$0xf]
  %v551 = vld [vmem:[%s3 + $0x68] sm:$0xf]
  %v552 = vld [vmem:[%s3 + $0x6c] sm:$0xf]
  %v553 = vld [vmem:[%s3 + $0x70] sm:$0xf]
  %v554 = vld [vmem:[%s3 + $0x74] sm:$0xf]
  %v555 = vld [vmem:[%s3 + $0x78] sm:$0xf]
  %v556 = vld [vmem:[%s3 + $0x7c] sm:$0xf]
  %v557 = vld [vmem:[%s4] sm:$0x1]
  %v559 = vlaneseq
  %v560 = vshrl.u32 %v559, 7
  %v561 = vsub.s32 0, %v560
  %v562 = vrot.slane %v557, %v561
  %v596 = vunpack.c.l.b16 %v525
  %v597 = vunpack.c.l.b16 %v526
  %v598 = vunpack.c.l.b16 %v527
  %v599 = vunpack.c.l.b16 %v528
  %v600 = vunpack.c.l.b16 %v529
  %v601 = vunpack.c.l.b16 %v530
  %v602 = vunpack.c.l.b16 %v531
  %v603 = vunpack.c.l.b16 %v532
  %v604 = vunpack.c.l.b16 %v533
  %v605 = vunpack.c.l.b16 %v534
  %v606 = vunpack.c.l.b16 %v535
  %v607 = vunpack.c.l.b16 %v536
  %v608 = vunpack.c.l.b16 %v537
  %v609 = vunpack.c.l.b16 %v538
  %v610 = vunpack.c.l.b16 %v539
  %v611 = vunpack.c.l.b16 %v540
  %v612 = vunpack.c.l.b16 %v541
  %v613 = vunpack.c.l.b16 %v542
  %v614 = vunpack.c.l.b16 %v543
  %v615 = vunpack.c.l.b16 %v544
  %v616 = vunpack.c.l.b16 %v545
  %v617 = vunpack.c.l.b16 %v546
  %v618 = vunpack.c.l.b16 %v547
  %v619 = vunpack.c.l.b16 %v548
  %v620 = vunpack.c.l.b16 %v549
  %v621 = vunpack.c.l.b16 %v550
  %v622 = vunpack.c.l.b16 %v551
  %v623 = vunpack.c.l.b16 %v552
  %v624 = vunpack.c.l.b16 %v553
  %v625 = vunpack.c.l.b16 %v554
  %v626 = vunpack.c.l.b16 %v555
  %v627 = vunpack.c.l.b16 %v556
  %v628 = vpack.c.b16 %v597, %v596
  %v629 = vpack.c.b16 %v599, %v598
  %v630 = vpack.c.b16 %v601, %v600
  %v631 = vpack.c.b16 %v603, %v602
  %v632 = vpack.c.b16 %v605, %v604
  %v633 = vpack.c.b16 %v607, %v606
  %v634 = vpack.c.b16 %v609, %v608
  %v635 = vpack.c.b16 %v611, %v610
  %v636 = vpack.c.b16 %v613, %v612
  %v637 = vpack.c.b16 %v615, %v614
  %v638 = vpack.c.b16 %v617, %v616
  %v639 = vpack.c.b16 %v619, %v618
  %v640 = vpack.c.b16 %v621, %v620
  %v641 = vpack.c.b16 %v623, %v622
  %v642 = vpack.c.b16 %v625, %v624
  %v643 = vpack.c.b16 %v627, %v626
  %660 = vmatprep.subr.bf16.mxu0 0
  %661 = vmatpush1.bf16.msra.mxu0 %v635
  %662 = vmatprep.subr.bf16.mxu0 0
  %663 = vmatpush1.bf16.msra.mxu0 %v634
  %664 = vmatprep.subr.bf16.mxu0 0
  %665 = vmatpush1.bf16.msra.mxu0 %v633
  %666 = vmatprep.subr.bf16.mxu0 0
  %667 = vmatpush1.bf16.msra.mxu0 %v632
  %668 = vmatprep.subr.bf16.mxu0 0
  %669 = vmatpush1.bf16.msra.mxu0 %v631
  %670 = vmatprep.subr.bf16.mxu0 0
  %671 = vmatpush1.bf16.msra.mxu0 %v630
  %672 = vmatprep.subr.bf16.mxu0 0
  %673 = vmatpush1.bf16.msra.mxu0 %v629
  %674 = vmatprep.subr.bf16.mxu0 0
  %675 = vmatpush1.bf16.msra.mxu0 %v628
  %676 = vmatprep.subr.bf16.mxu0 0
  %677 = vmatpush2.bf16.msra.mxu0 %v643
  %678 = vmatprep.subr.bf16.mxu0 0
  %679 = vmatpush2.bf16.msra.mxu0 %v642
  %680 = vmatprep.subr.bf16.mxu0 0
  %681 = vmatpush2.bf16.msra.mxu0 %v641
  %682 = vmatprep.subr.bf16.mxu0 0
  %683 = vmatpush2.bf16.msra.mxu0 %v640
  %684 = vmatprep.subr.bf16.mxu0 0
  %685 = vmatpush2.bf16.msra.mxu0 %v639
  %686 = vmatprep.subr.bf16.mxu0 0
  %687 = vmatpush2.bf16.msra.mxu0 %v638
  %688 = vmatprep.subr.bf16.mxu0 0
  %689 = vmatpush2.bf16.msra.mxu0 %v637
  %690 = vmatprep.subr.bf16.mxu0 0
  %691 = vmatpush2.bf16.msra.mxu0 %v636
  %692 = vmatprep.mubr.bf16.mxu0 %v494
  %693 = vmatmul.mubr.bf16.gmra.mxu0 %v493
  %v694 = vpop.f32.mrf.mxu0
  %v695 = vadd.f32 %v562, %v694
  %v696 = vpop.f32.mrf.mxu0
  %v697 = vpop.f32.mrf.mxu0
  %v698 = vadd.f32 %v562, %v697
  %v699 = vpop.f32.mrf.mxu0
  %700 = vmatprep.mubr.bf16.mxu0 %v496
  %701 = vmatmul.mubr.bf16.gmra.mxu0 %v495
  %v702 = vpop.f32.mrf.mxu0
  %v703 = vadd.f32 %v562, %v702
  %v704 = vpop.f32.mrf.mxu0
  %v705 = vpop.f32.mrf.mxu0
  %v706 = vadd.f32 %v562, %v705
  %v707 = vpop.f32.mrf.mxu0
  %708 = vmatprep.mubr.bf16.mxu0 %v498
  %709 = vmatmul.mubr.bf16.gmra.mxu0 %v497
  %v710 = vpop.f32.mrf.mxu0
  %v711 = vadd.f32 %v562, %v710
  %v712 = vpop.f32.mrf.mxu0
  %v713 = vpop.f32.mrf.mxu0
  %v714 = vadd.f32 %v562, %v713
  %v715 = vpop.f32.mrf.mxu0
  %716 = vmatprep.mubr.bf16.mxu0 %v500
  %717 = vmatmul.mubr.bf16.gmra.mxu0 %v499
  %v718 = vpop.f32.mrf.mxu0
  %v719 = vadd.f32 %v562, %v718
  %v720 = vpop.f32.mrf.mxu0
  %v721 = vpop.f32.mrf.mxu0
  %v722 = vadd.f32 %v562, %v721
  %v723 = vpop.f32.mrf.mxu0
  %724 = vmatprep.mubr.bf16.mxu0 %v502
  %725 = vmatmul.mubr.bf16.gmra.mxu0 %v501
  %v726 = vpop.f32.mrf.mxu0
  %v727 = vadd.f32 %v562, %v726
  %v728 = vpop.f32.mrf.mxu0
  %v729 = vpop.f32.mrf.mxu0
  %v730 = vadd.f32 %v562, %v729
  %v731 = vpop.f32.mrf.mxu0
  %732 = vmatprep.mubr.bf16.mxu0 %v504
  %733 = vmatmul.mubr.bf16.gmra.mxu0 %v503
  %v734 = vpop.f32.mrf.mxu0
  %v735 = vadd.f32 %v562, %v734
  %v736 = vpop.f32.mrf.mxu0
  %v737 = vpop.f32.mrf.mxu0
  %v738 = vadd.f32 %v562, %v737
  %v739 = vpop.f32.mrf.mxu0
  %740 = vmatprep.mubr.bf16.mxu0 %v506
  %741 = vmatmul.mubr.bf16.gmra.mxu0 %v505
  %v742 = vpop.f32.mrf.mxu0
  %v743 = vadd.f32 %v562, %v742
  %v744 = vpop.f32.mrf.mxu0
  %v745 = vpop.f32.mrf.mxu0
  %v746 = vadd.f32 %v562, %v745
  %v747 = vpop.f32.mrf.mxu0
  %748 = vmatprep.mubr.bf16.mxu0 %v508
  %749 = vmatmul.mubr.bf16.gmra.mxu0 %v507
  %v750 = vpop.f32.mrf.mxu0
  %v751 = vadd.f32 %v562, %v750
  %v752 = vpop.f32.mrf.mxu0
  %v753 = vpop.f32.mrf.mxu0
  %v754 = vadd.f32 %v562, %v753
  %v755 = vpop.f32.mrf.mxu0
  %756 = vmatprep.mubr.bf16.mxu0 %v510
  %757 = vmatmul.mubr.bf16.gmra.mxu0 %v509
  %v758 = vpop.f32.mrf.mxu0
  %v759 = vadd.f32 %v562, %v758
  %v760 = vpop.f32.mrf.mxu0
  %v761 = vpop.f32.mrf.mxu0
  %v762 = vadd.f32 %v562, %v761
  %v763 = vpop.f32.mrf.mxu0
  %764 = vmatprep.mubr.bf16.mxu0 %v512
  %765 = vmatmul.mubr.bf16.gmra.mxu0 %v511
  %v766 = vpop.f32.mrf.mxu0
  %v767 = vadd.f32 %v562, %v766
  %v768 = vpop.f32.mrf.mxu0
  %v769 = vpop.f32.mrf.mxu0
  %v770 = vadd.f32 %v562, %v769
  %v771 = vpop.f32.mrf.mxu0
  %772 = vmatprep.mubr.bf16.mxu0 %v514
  %773 = vmatmul.mubr.bf16.gmra.mxu0 %v513
  %v774 = vpop.f32.mrf.mxu0
  %v775 = vadd.f32 %v562, %v774
  %v776 = vpop.f32.mrf.mxu0
  %v777 = vpop.f32.mrf.mxu0
  %v778 = vadd.f32 %v562, %v777
  %v779 = vpop.f32.mrf.mxu0
  %780 = vmatprep.mubr.bf16.mxu0 %v516
  %781 = vmatmul.mubr.bf16.gmra.mxu0 %v515
  %v782 = vpop.f32.mrf.mxu0
  %v783 = vadd.f32 %v562, %v782
  %v784 = vpop.f32.mrf.mxu0
  %v785 = vpop.f32.mrf.mxu0
  %v786 = vadd.f32 %v562, %v785
  %v787 = vpop.f32.mrf.mxu0
  %788 = vmatprep.mubr.bf16.mxu0 %v518
  %789 = vmatmul.mubr.bf16.gmra.mxu0 %v517
  %v790 = vpop.f32.mrf.mxu0
  %v791 = vadd.f32 %v562, %v790
  %v792 = vpop.f32.mrf.mxu0
  %v793 = vpop.f32.mrf.mxu0
  %v794 = vadd.f32 %v562, %v793
  %v795 = vpop.f32.mrf.mxu0
  %796 = vmatprep.mubr.bf16.mxu0 %v520
  %797 = vmatmul.mubr.bf16.gmra.mxu0 %v519
  %v798 = vpop.f32.mrf.mxu0
  %v799 = vadd.f32 %v562, %v798
  %v800 = vpop.f32.mrf.mxu0
  %v801 = vpop.f32.mrf.mxu0
  %v802 = vadd.f32 %v562, %v801
  %v803 = vpop.f32.mrf.mxu0
  %804 = vmatprep.mubr.bf16.mxu0 %v522
  %805 = vmatmul.mubr.bf16.gmra.mxu0 %v521
  %v806 = vpop.f32.mrf.mxu0
  %v807 = vadd.f32 %v562, %v806
  %v808 = vpop.f32.mrf.mxu0
  %v809 = vpop.f32.mrf.mxu0
  %v810 = vadd.f32 %v562, %v809
  %v811 = vpop.f32.mrf.mxu0
  %812 = vmatprep.mubr.bf16.mxu0 %v524
  %813 = vmatmul.mubr.bf16.gmra.mxu0 %v523
  %v814 = vpop.f32.mrf.mxu0
  %v815 = vadd.f32 %v562, %v814
  %v816 = vpop.f32.mrf.mxu0
  %v817 = vpop.f32.mrf.mxu0
  %v818 = vadd.f32 %v562, %v817
  %v819 = vpop.f32.mrf.mxu0
  %820 = vdwg.mxu0
  %v821 = vmax.f32 %v695, 0.0
  %v822 = vmax.f32 %v698, 0.0
  %v823 = vmax.f32 %v703, 0.0
  %v824 = vmax.f32 %v706, 0.0
  %v825 = vmax.f32 %v711, 0.0
  %v826 = vmax.f32 %v714, 0.0
  %v827 = vmax.f32 %v719, 0.0
  %v828 = vmax.f32 %v722, 0.0
  %v829 = vmax.f32 %v727, 0.0
  %v830 = vmax.f32 %v730, 0.0
  %v831 = vmax.f32 %v735, 0.0
  %v832 = vmax.f32 %v738, 0.0
  %v833 = vmax.f32 %v743, 0.0
  %v834 = vmax.f32 %v746, 0.0
  %v835 = vmax.f32 %v751, 0.0
  %v836 = vmax.f32 %v754, 0.0
  %v837 = vmax.f32 %v759, 0.0
  %v838 = vmax.f32 %v762, 0.0
  %v839 = vmax.f32 %v767, 0.0
  %v840 = vmax.f32 %v770, 0.0
  %v841 = vmax.f32 %v775, 0.0
  %v842 = vmax.f32 %v778, 0.0
  %v843 = vmax.f32 %v783, 0.0
  %v844 = vmax.f32 %v786, 0.0
  %v845 = vmax.f32 %v791, 0.0
  %v846 = vmax.f32 %v794, 0.0
  %v847 = vmax.f32 %v799, 0.0
  %v848 = vmax.f32 %v802, 0.0
  %v849 = vmax.f32 %v807, 0.0
  %v850 = vmax.f32 %v810, 0.0
  %v851 = vmax.f32 %v815, 0.0
  %v852 = vmax.f32 %v818, 0.0
  %v853 = vpack.c.bf16 %v822, %v821
  %v854 = vpack.c.bf16 %v824, %v823
  %v855 = vpack.c.bf16 %v826, %v825
  %v856 = vpack.c.bf16 %v828, %v827
  %v857 = vpack.c.bf16 %v830, %v829
  %v858 = vpack.c.bf16 %v832, %v831
  %v859 = vpack.c.bf16 %v834, %v833
  %v860 = vpack.c.bf16 %v836, %v835
  %v861 = vpack.c.bf16 %v838, %v837
  %v862 = vpack.c.bf16 %v840, %v839
  %v863 = vpack.c.bf16 %v842, %v841
  %v864 = vpack.c.bf16 %v844, %v843
  %v865 = vpack.c.bf16 %v846, %v845
  %v866 = vpack.c.bf16 %v848, %v847
  %v867 = vpack.c.bf16 %v850, %v849
  %v868 = vpack.c.bf16 %v852, %v851
  %v869 = vld [vmem:[%s5] sm:$0xf]
  %v870 = vld [vmem:[%s5 + $0x4] sm:$0xf]
  %v871 = vld [vmem:[%s5 + $0x8] sm:$0xf]
  %v872 = vld [vmem:[%s5 + $0xc] sm:$0xf]
  %v873 = vld [vmem:[%s5 + $0x10] sm:$0xf]
  %v874 = vld [vmem:[%s5 + $0x14] sm:$0xf]
  %v875 = vld [vmem:[%s5 + $0x18] sm:$0xf]
  %v876 = vld [vmem:[%s5 + $0x1c] sm:$0xf]
  %v877 = vld [vmem:[%s5 + $0x20] sm:$0xf]
  %v878 = vld [vmem:[%s5 + $0x24] sm:$0xf]
  %v879 = vld [vmem:[%s5 + $0x28] sm:$0xf]
  %v880 = vld [vmem:[%s5 + $0x2c] sm:$0xf]
  %v881 = vld [vmem:[%s5 + $0x30] sm:$0xf]
  %v882 = vld [vmem:[%s5 + $0x34] sm:$0xf]
  %v883 = vld [vmem:[%s5 + $0x38] sm:$0xf]
  %v884 = vld [vmem:[%s5 + $0x3c] sm:$0xf]
  %v885 = vld [vmem:[%s6] sm:$0x1]
  %v887 = vlaneseq
  %v888 = vshrl.u32 %v887, 7
  %v889 = vsub.s32 0, %v888
  %v890 = vrot.slane %v885, %v889
  %v908 = vunpack.c.l.b16 %v869
  %v909 = vunpack.c.l.b16 %v870
  %v910 = vunpack.c.l.b16 %v871
  %v911 = vunpack.c.l.b16 %v872
  %v912 = vunpack.c.l.b16 %v873
  %v913 = vunpack.c.l.b16 %v874
  %v914 = vunpack.c.l.b16 %v875
  %v915 = vunpack.c.l.b16 %v876
  %v916 = vunpack.c.l.b16 %v877
  %v917 = vunpack.c.l.b16 %v878
  %v918 = vunpack.c.l.b16 %v879
  %v919 = vunpack.c.l.b16 %v880
  %v920 = vunpack.c.l.b16 %v881
  %v921 = vunpack.c.l.b16 %v882
  %v922 = vunpack.c.l.b16 %v883
  %v923 = vunpack.c.l.b16 %v884
  %v924 = vpack.c.b16 %v909, %v908
  %v925 = vpack.c.b16 %v911, %v910
  %v926 = vpack.c.b16 %v913, %v912
  %v927 = vpack.c.b16 %v915, %v914
  %v928 = vpack.c.b16 %v917, %v916
  %v929 = vpack.c.b16 %v919, %v918
  %v930 = vpack.c.b16 %v921, %v920
  %v931 = vpack.c.b16 %v923, %v922
  %940 = vmatprep.subr.bf16.mxu0 0
  %941 = vmatpush1.bf16.msra.mxu0 %v931
  %942 = vmatprep.subr.bf16.mxu0 0
  %943 = vmatpush1.bf16.msra.mxu0 %v930
  %944 = vmatprep.subr.bf16.mxu0 0
  %945 = vmatpush1.bf16.msra.mxu0 %v929
  %946 = vmatprep.subr.bf16.mxu0 0
  %947 = vmatpush1.bf16.msra.mxu0 %v928
  %948 = vmatprep.subr.bf16.mxu0 0
  %949 = vmatpush1.bf16.msra.mxu0 %v927
  %950 = vmatprep.subr.bf16.mxu0 0
  %951 = vmatpush1.bf16.msra.mxu0 %v926
  %952 = vmatprep.subr.bf16.mxu0 0
  %953 = vmatpush1.bf16.msra.mxu0 %v925
  %954 = vmatprep.subr.bf16.mxu0 0
  %955 = vmatpush1.bf16.msra.mxu0 %v924
  %956 = vmatprep.subr.bf16.mxu0 0
  %957 = vmatpush2.bf16.msra.mxu0 0
  %958 = vmatprep.subr.bf16.mxu0 0
  %959 = vmatpush2.bf16.msra.mxu0 0
  %960 = vmatprep.subr.bf16.mxu0 0
  %961 = vmatpush2.bf16.msra.mxu0 0
  %962 = vmatprep.subr.bf16.mxu0 0
  %963 = vmatpush2.bf16.msra.mxu0 0
  %964 = vmatprep.subr.bf16.mxu0 0
  %965 = vmatpush2.bf16.msra.mxu0 0
  %966 = vmatprep.subr.bf16.mxu0 0
  %967 = vmatpush2.bf16.msra.mxu0 0
  %968 = vmatprep.subr.bf16.mxu0 0
  %969 = vmatpush2.bf16.msra.mxu0 0
  %970 = vmatprep.subr.bf16.mxu0 0
  %971 = vmatpush2.bf16.msra.mxu0 0
  %972 = vmatprep.mubr.bf16.mxu0 0
  %973 = vmatmul.mubr.bf16.gmra.mxu0 %v853
  %v974 = vpop.f32.mrf.mxu0
  %v975 = vadd.f32 %v890, %v974
  %v976 = vpop.f32.mrf.mxu0
  %v977 = vpop.f32.mrf.mxu0
  %v978 = vadd.f32 %v890, %v977
  %v979 = vpop.f32.mrf.mxu0
  %980 = vmatprep.mubr.bf16.mxu0 0
  %981 = vmatmul.mubr.bf16.gmra.mxu0 %v854
  %v982 = vpop.f32.mrf.mxu0
  %v983 = vadd.f32 %v890, %v982
  %v984 = vpop.f32.mrf.mxu0
  %v985 = vpop.f32.mrf.mxu0
  %v986 = vadd.f32 %v890, %v985
  %v987 = vpop.f32.mrf.mxu0
  %988 = vmatprep.mubr.bf16.mxu0 0
  %989 = vmatmul.mubr.bf16.gmra.mxu0 %v855
  %v990 = vpop.f32.mrf.mxu0
  %v991 = vadd.f32 %v890, %v990
  %v992 = vpop.f32.mrf.mxu0
  %v993 = vpop.f32.mrf.mxu0
  %v994 = vadd.f32 %v890, %v993
  %v995 = vpop.f32.mrf.mxu0
  %996 = vmatprep.mubr.bf16.mxu0 0
  %997 = vmatmul.mubr.bf16.gmra.mxu0 %v856
  %v998 = vpop.f32.mrf.mxu0
  %v999 = vadd.f32 %v890, %v998
  %v1000 = vpop.f32.mrf.mxu0
  %v1001 = vpop.f32.mrf.mxu0
  %v1002 = vadd.f32 %v890, %v1001
  %v1003 = vpop.f32.mrf.mxu0
  %1004 = vmatprep.mubr.bf16.mxu0 0
  %1005 = vmatmul.mubr.bf16.gmra.mxu0 %v857
  %v1006 = vpop.f32.mrf.mxu0
  %v1007 = vadd.f32 %v890, %v1006
  %v1008 = vpop.f32.mrf.mxu0
  %v1009 = vpop.f32.mrf.mxu0
  %v1010 = vadd.f32 %v890, %v1009
  %v1011 = vpop.f32.mrf.mxu0
  %1012 = vmatprep.mubr.bf16.mxu0 0
  %1013 = vmatmul.mubr.bf16.gmra.mxu0 %v858
  %v1014 = vpop.f32.mrf.mxu0
  %v1015 = vadd.f32 %v890, %v1014
  %v1016 = vpop.f32.mrf.mxu0
  %v1017 = vpop.f32.mrf.mxu0
  %v1018 = vadd.f32 %v890, %v1017
  %v1019 = vpop.f32.mrf.mxu0
  %1020 = vmatprep.mubr.bf16.mxu0 0
  %1021 = vmatmul.mubr.bf16.gmra.mxu0 %v859
  %v1022 = vpop.f32.mrf.mxu0
  %v1023 = vadd.f32 %v890, %v1022
  %v1024 = vpop.f32.mrf.mxu0
  %v1025 = vpop.f32.mrf.mxu0
  %v1026 = vadd.f32 %v890, %v1025
  %v1027 = vpop.f32.mrf.mxu0
  %1028 = vmatprep.mubr.bf16.mxu0 0
  %1029 = vmatmul.mubr.bf16.gmra.mxu0 %v860
  %v1030 = vpop.f32.mrf.mxu0
  %v1031 = vadd.f32 %v890, %v1030
  %v1032 = vpop.f32.mrf.mxu0
  %v1033 = vpop.f32.mrf.mxu0
  %v1034 = vadd.f32 %v890, %v1033
  %v1035 = vpop.f32.mrf.mxu0
  %1036 = vmatprep.mubr.bf16.mxu0 0
  %1037 = vmatmul.mubr.bf16.gmra.mxu0 %v861
  %v1038 = vpop.f32.mrf.mxu0
  %v1039 = vadd.f32 %v890, %v1038
  %v1040 = vpop.f32.mrf.mxu0
  %v1041 = vpop.f32.mrf.mxu0
  %v1042 = vadd.f32 %v890, %v1041
  %v1043 = vpop.f32.mrf.mxu0
  %1044 = vmatprep.mubr.bf16.mxu0 0
  %1045 = vmatmul.mubr.bf16.gmra.mxu0 %v862
  %v1046 = vpop.f32.mrf.mxu0
  %v1047 = vadd.f32 %v890, %v1046
  %v1048 = vpop.f32.mrf.mxu0
  %v1049 = vpop.f32.mrf.mxu0
  %v1050 = vadd.f32 %v890, %v1049
  %v1051 = vpop.f32.mrf.mxu0
  %1052 = vmatprep.mubr.bf16.mxu0 0
  %1053 = vmatmul.mubr.bf16.gmra.mxu0 %v863
  %v1054 = vpop.f32.mrf.mxu0
  %v1055 = vadd.f32 %v890, %v1054
  %v1056 = vpop.f32.mrf.mxu0
  %v1057 = vpop.f32.mrf.mxu0
  %v1058 = vadd.f32 %v890, %v1057
  %v1059 = vpop.f32.mrf.mxu0
  %1060 = vmatprep.mubr.bf16.mxu0 0
  %1061 = vmatmul.mubr.bf16.gmra.mxu0 %v864
  %v1062 = vpop.f32.mrf.mxu0
  %v1063 = vadd.f32 %v890, %v1062
  %v1064 = vpop.f32.mrf.mxu0
  %v1065 = vpop.f32.mrf.mxu0
  %v1066 = vadd.f32 %v890, %v1065
  %v1067 = vpop.f32.mrf.mxu0
  %1068 = vmatprep.mubr.bf16.mxu0 0
  %1069 = vmatmul.mubr.bf16.gmra.mxu0 %v865
  %v1070 = vpop.f32.mrf.mxu0
  %v1071 = vadd.f32 %v890, %v1070
  %v1072 = vpop.f32.mrf.mxu0
  %v1073 = vpop.f32.mrf.mxu0
  %v1074 = vadd.f32 %v890, %v1073
  %v1075 = vpop.f32.mrf.mxu0
  %1076 = vmatprep.mubr.bf16.mxu0 0
  %1077 = vmatmul.mubr.bf16.gmra.mxu0 %v866
  %v1078 = vpop.f32.mrf.mxu0
  %v1079 = vadd.f32 %v890, %v1078
  %v1080 = vpop.f32.mrf.mxu0
  %v1081 = vpop.f32.mrf.mxu0
  %v1082 = vadd.f32 %v890, %v1081
  %v1083 = vpop.f32.mrf.mxu0
  %1084 = vmatprep.mubr.bf16.mxu0 0
  %1085 = vmatmul.mubr.bf16.gmra.mxu0 %v867
  %v1086 = vpop.f32.mrf.mxu0
  %v1087 = vadd.f32 %v890, %v1086
  %v1088 = vpop.f32.mrf.mxu0
  %v1089 = vpop.f32.mrf.mxu0
  %v1090 = vadd.f32 %v890, %v1089
  %v1091 = vpop.f32.mrf.mxu0
  %1092 = vmatprep.mubr.bf16.mxu0 0
  %1093 = vmatmul.mubr.bf16.gmra.mxu0 %v868
  %v1094 = vpop.f32.mrf.mxu0
  %v1095 = vadd.f32 %v890, %v1094
  %v1096 = vpop.f32.mrf.mxu0
  %v1097 = vpop.f32.mrf.mxu0
  %v1098 = vadd.f32 %v890, %v1097
  %v1099 = vpop.f32.mrf.mxu0
  %1100 = vdwg.mxu0
  %v1101 = vmax.f32 %v975, 0.0
  %v1102 = vmax.f32 %v978, 0.0
  %v1103 = vmax.f32 %v983, 0.0
  %v1104 = vmax.f32 %v986, 0.0
  %v1105 = vmax.f32 %v991, 0.0
  %v1106 = vmax.f32 %v994, 0.0
  %v1107 = vmax.f32 %v999, 0.0
  %v1108 = vmax.f32 %v1002, 0.0
  %v1109 = vmax.f32 %v1007, 0.0
  %v1110 = vmax.f32 %v1010, 0.0
  %v1111 = vmax.f32 %v1015, 0.0
  %v1112 = vmax.f32 %v1018, 0.0
  %v1113 = vmax.f32 %v1023, 0.0
  %v1114 = vmax.f32 %v1026, 0.0
  %v1115 = vmax.f32 %v1031, 0.0
  %v1116 = vmax.f32 %v1034, 0.0
  %v1117 = vmax.f32 %v1039, 0.0
  %v1118 = vmax.f32 %v1042, 0.0
  %v1119 = vmax.f32 %v1047, 0.0
  %v1120 = vmax.f32 %v1050, 0.0
  %v1121 = vmax.f32 %v1055, 0.0
  %v1122 = vmax.f32 %v1058, 0.0
  %v1123 = vmax.f32 %v1063, 0.0
  %v1124 = vmax.f32 %v1066, 0.0
  %v1125 = vmax.f32 %v1071, 0.0
  %v1126 = vmax.f32 %v1074, 0.0
  %v1127 = vmax.f32 %v1079, 0.0
  %v1128 = vmax.f32 %v1082, 0.0
  %v1129 = vmax.f32 %v1087, 0.0
  %v1130 = vmax.f32 %v1090, 0.0
  %v1131 = vmax.f32 %v1095, 0.0
  %v1132 = vmax.f32 %v1098, 0.0
  %v1133 = vpack.c.bf16 %v1102, %v1101
  %v1134 = vpack.c.bf16 %v1104, %v1103
  %v1135 = vpack.c.bf16 %v1106, %v1105
  %v1136 = vpack.c.bf16 %v1108, %v1107
  %v1137 = vpack.c.bf16 %v1110, %v1109
  %v1138 = vpack.c.bf16 %v1112, %v1111
  %v1139 = vpack.c.bf16 %v1114, %v1113
  %v1140 = vpack.c.bf16 %v1116, %v1115
  %v1141 = vpack.c.bf16 %v1118, %v1117
  %v1142 = vpack.c.bf16 %v1120, %v1119
  %v1143 = vpack.c.bf16 %v1122, %v1121
  %v1144 = vpack.c.bf16 %v1124, %v1123
  %v1145 = vpack.c.bf16 %v1126, %v1125
  %v1146 = vpack.c.bf16 %v1128, %v1127
  %v1147 = vpack.c.bf16 %v1130, %v1129
  %v1148 = vpack.c.bf16 %v1132, %v1131
  %v1149 = vld [vmem:[%s7] sm:$0xf]
  %v1150 = vld [vmem:[%s7 + $0x4] sm:$0xf]
  %v1151 = vld [vmem:[%s7 + $0x8] sm:$0xf]
  %v1152 = vld [vmem:[%s7 + $0xc] sm:$0xf]
  %v1153 = vld [vmem:[%s7 + $0x10] sm:$0xf]
  %v1154 = vld [vmem:[%s7 + $0x14] sm:$0xf]
  %v1155 = vld [vmem:[%s7 + $0x18] sm:$0xf]
  %v1156 = vld [vmem:[%s7 + $0x1c] sm:$0xf]
  %v1157 = vld [vmem:[%s8] sm:$0x1]
  %v1159 = vlaneseq
  %v1160 = vshrl.u32 %v1159, 7
  %v1161 = vsub.s32 0, %v1160
  %v1162 = vrot.slane %v1157, %v1161
  %v1172 = vunpack.c.l.b16 %v1149
  %v1173 = vunpack.c.l.b16 %v1150
  %v1174 = vunpack.c.l.b16 %v1151
  %v1175 = vunpack.c.l.b16 %v1152
  %v1176 = vunpack.c.l.b16 %v1153
  %v1177 = vunpack.c.l.b16 %v1154
  %v1178 = vunpack.c.l.b16 %v1155
  %v1179 = vunpack.c.l.b16 %v1156
  %v1180 = vpack.c.b16 %v1173, %v1172
  %v1181 = vpack.c.b16 %v1175, %v1174
  %v1182 = vpack.c.b16 %v1177, %v1176
  %v1183 = vpack.c.b16 %v1179, %v1178
  %vm1188 = vcmask 523264
  %v1190 = vsel %vm1188, %v1133, 0
  %v1193 = vsel %vm1188, %v1134, 0
  %v1196 = vsel %vm1188, %v1135, 0
  %v1199 = vsel %vm1188, %v1136, 0
  %v1202 = vsel %vm1188, %v1137, 0
  %v1205 = vsel %vm1188, %v1138, 0
  %v1208 = vsel %vm1188, %v1139, 0
  %v1211 = vsel %vm1188, %v1140, 0
  %v1214 = vsel %vm1188, %v1141, 0
  %v1217 = vsel %vm1188, %v1142, 0
  %v1220 = vsel %vm1188, %v1143, 0
  %v1223 = vsel %vm1188, %v1144, 0
  %v1226 = vsel %vm1188, %v1145, 0
  %v1229 = vsel %vm1188, %v1146, 0
  %v1232 = vsel %vm1188, %v1147, 0
  %v1235 = vsel %vm1188, %v1148, 0
  %1237 = vmatprep.subr.bf16.mxu0 0
  %1238 = vmatpush1.bf16.msra.mxu0 0
  %1239 = vmatprep.subr.bf16.mxu0 0
  %1240 = vmatpush1.bf16.msra.mxu0 0
  %1241 = vmatprep.subr.bf16.mxu0 0
  %1242 = vmatpush1.bf16.msra.mxu0 0
  %1243 = vmatprep.subr.bf16.mxu0 0
  %1244 = vmatpush1.bf16.msra.mxu0 0
  %1245 = vmatprep.subr.bf16.mxu0 0
  %1246 = vmatpush1.bf16.msra.mxu0 %v1183
  %1247 = vmatprep.subr.bf16.mxu0 0
  %1248 = vmatpush1.bf16.msra.mxu0 %v1182
  %1249 = vmatprep.subr.bf16.mxu0 0
  %1250 = vmatpush1.bf16.msra.mxu0 %v1181
  %1251 = vmatprep.subr.bf16.mxu0 0
  %1252 = vmatpush1.bf16.msra.mxu0 %v1180
  %1253 = vmatprep.subr.bf16.mxu0 0
  %1254 = vmatpush2.bf16.msra.mxu0 0
  %1255 = vmatprep.subr.bf16.mxu0 0
  %1256 = vmatpush2.bf16.msra.mxu0 0
  %1257 = vmatprep.subr.bf16.mxu0 0
  %1258 = vmatpush2.bf16.msra.mxu0 0
  %1259 = vmatprep.subr.bf16.mxu0 0
  %1260 = vmatpush2.bf16.msra.mxu0 0
  %1261 = vmatprep.subr.bf16.mxu0 0
  %1262 = vmatpush2.bf16.msra.mxu0 0
  %1263 = vmatprep.subr.bf16.mxu0 0
  %1264 = vmatpush2.bf16.msra.mxu0 0
  %1265 = vmatprep.subr.bf16.mxu0 0
  %1266 = vmatpush2.bf16.msra.mxu0 0
  %1267 = vmatprep.subr.bf16.mxu0 0
  %1268 = vmatpush2.bf16.msra.mxu0 0
  %1269 = vmatprep.mubr.bf16.mxu0 0
  %1270 = vmatmul.mubr.bf16.gmra.mxu0 %v1190
  %v1271 = vpop.f32.mrf.mxu0
  %v1272 = vadd.f32 %v1162, %v1271
  %v1273 = vpop.f32.mrf.mxu0
  %v1274 = vpop.f32.mrf.mxu0
  %v1275 = vadd.f32 %v1162, %v1274
  %v1276 = vpop.f32.mrf.mxu0
  %1277 = vmatprep.mubr.bf16.mxu0 0
  %1278 = vmatmul.mubr.bf16.gmra.mxu0 %v1193
  %v1279 = vpop.f32.mrf.mxu0
  %v1280 = vadd.f32 %v1162, %v1279
  %v1281 = vpop.f32.mrf.mxu0
  %v1282 = vpop.f32.mrf.mxu0
  %v1283 = vadd.f32 %v1162, %v1282
  %v1284 = vpop.f32.mrf.mxu0
  %1285 = vmatprep.mubr.bf16.mxu0 0
  %1286 = vmatmul.mubr.bf16.gmra.mxu0 %v1196
  %v1287 = vpop.f32.mrf.mxu0
  %v1288 = vadd.f32 %v1162, %v1287
  %v1289 = vpop.f32.mrf.mxu0
  %v1290 = vpop.f32.mrf.mxu0
  %v1291 = vadd.f32 %v1162, %v1290
  %v1292 = vpop.f32.mrf.mxu0
  %1293 = vmatprep.mubr.bf16.mxu0 0
  %1294 = vmatmul.mubr.bf16.gmra.mxu0 %v1199
  %v1295 = vpop.f32.mrf.mxu0
  %v1296 = vadd.f32 %v1162, %v1295
  %v1297 = vpop.f32.mrf.mxu0
  %v1298 = vpop.f32.mrf.mxu0
  %v1299 = vadd.f32 %v1162, %v1298
  %v1300 = vpop.f32.mrf.mxu0
  %1301 = vmatprep.mubr.bf16.mxu0 0
  %1302 = vmatmul.mubr.bf16.gmra.mxu0 %v1202
  %v1303 = vpop.f32.mrf.mxu0
  %v1304 = vadd.f32 %v1162, %v1303
  %v1305 = vpop.f32.mrf.mxu0
  %v1306 = vpop.f32.mrf.mxu0
  %v1307 = vadd.f32 %v1162, %v1306
  %v1308 = vpop.f32.mrf.mxu0
  %1309 = vmatprep.mubr.bf16.mxu0 0
  %1310 = vmatmul.mubr.bf16.gmra.mxu0 %v1205
  %v1311 = vpop.f32.mrf.mxu0
  %v1312 = vadd.f32 %v1162, %v1311
  %v1313 = vpop.f32.mrf.mxu0
  %v1314 = vpop.f32.mrf.mxu0
  %v1315 = vadd.f32 %v1162, %v1314
  %v1316 = vpop.f32.mrf.mxu0
  %1317 = vmatprep.mubr.bf16.mxu0 0
  %1318 = vmatmul.mubr.bf16.gmra.mxu0 %v1208
  %v1319 = vpop.f32.mrf.mxu0
  %v1320 = vadd.f32 %v1162, %v1319
  %v1321 = vpop.f32.mrf.mxu0
  %v1322 = vpop.f32.mrf.mxu0
  %v1323 = vadd.f32 %v1162, %v1322
  %v1324 = vpop.f32.mrf.mxu0
  %1325 = vmatprep.mubr.bf16.mxu0 0
  %1326 = vmatmul.mubr.bf16.gmra.mxu0 %v1211
  %v1327 = vpop.f32.mrf.mxu0
  %v1328 = vadd.f32 %v1162, %v1327
  %v1329 = vpop.f32.mrf.mxu0
  %v1330 = vpop.f32.mrf.mxu0
  %v1331 = vadd.f32 %v1162, %v1330
  %v1332 = vpop.f32.mrf.mxu0
  %1333 = vmatprep.mubr.bf16.mxu0 0
  %1334 = vmatmul.mubr.bf16.gmra.mxu0 %v1214
  %v1335 = vpop.f32.mrf.mxu0
  %v1336 = vadd.f32 %v1162, %v1335
  %v1337 = vpop.f32.mrf.mxu0
  %v1338 = vpop.f32.mrf.mxu0
  %v1339 = vadd.f32 %v1162, %v1338
  %v1340 = vpop.f32.mrf.mxu0
  %1341 = vmatprep.mubr.bf16.mxu0 0
  %1342 = vmatmul.mubr.bf16.gmra.mxu0 %v1217
  %v1343 = vpop.f32.mrf.mxu0
  %v1344 = vadd.f32 %v1162, %v1343
  %v1345 = vpop.f32.mrf.mxu0
  %v1346 = vpop.f32.mrf.mxu0
  %v1347 = vadd.f32 %v1162, %v1346
  %v1348 = vpop.f32.mrf.mxu0
  %1349 = vmatprep.mubr.bf16.mxu0 0
  %1350 = vmatmul.mubr.bf16.gmra.mxu0 %v1220
  %v1351 = vpop.f32.mrf.mxu0
  %v1352 = vadd.f32 %v1162, %v1351
  %v1353 = vpop.f32.mrf.mxu0
  %v1354 = vpop.f32.mrf.mxu0
  %v1355 = vadd.f32 %v1162, %v1354
  %v1356 = vpop.f32.mrf.mxu0
  %1357 = vmatprep.mubr.bf16.mxu0 0
  %1358 = vmatmul.mubr.bf16.gmra.mxu0 %v1223
  %v1359 = vpop.f32.mrf.mxu0
  %v1360 = vadd.f32 %v1162, %v1359
  %v1361 = vpop.f32.mrf.mxu0
  %v1362 = vpop.f32.mrf.mxu0
  %v1363 = vadd.f32 %v1162, %v1362
  %v1364 = vpop.f32.mrf.mxu0
  %1365 = vmatprep.mubr.bf16.mxu0 0
  %1366 = vmatmul.mubr.bf16.gmra.mxu0 %v1226
  %v1367 = vpop.f32.mrf.mxu0
  %v1368 = vadd.f32 %v1162, %v1367
  %v1369 = vpop.f32.mrf.mxu0
  %v1370 = vpop.f32.mrf.mxu0
  %v1371 = vadd.f32 %v1162, %v1370
  %v1372 = vpop.f32.mrf.mxu0
  %1373 = vmatprep.mubr.bf16.mxu0 0
  %1374 = vmatmul.mubr.bf16.gmra.mxu0 %v1229
  %v1375 = vpop.f32.mrf.mxu0
  %v1376 = vadd.f32 %v1162, %v1375
  %v1377 = vpop.f32.mrf.mxu0
  %v1378 = vpop.f32.mrf.mxu0
  %v1379 = vadd.f32 %v1162, %v1378
  %v1380 = vpop.f32.mrf.mxu0
  %1381 = vmatprep.mubr.bf16.mxu0 0
  %1382 = vmatmul.mubr.bf16.gmra.mxu0 %v1232
  %v1383 = vpop.f32.mrf.mxu0
  %v1384 = vadd.f32 %v1162, %v1383
  %v1385 = vpop.f32.mrf.mxu0
  %v1386 = vpop.f32.mrf.mxu0
  %v1387 = vadd.f32 %v1162, %v1386
  %v1388 = vpop.f32.mrf.mxu0
  %1389 = vmatprep.mubr.bf16.mxu0 0
  %1390 = vmatmul.mubr.bf16.gmra.mxu0 %v1235
  %v1391 = vpop.f32.mrf.mxu0
  %v1392 = vadd.f32 %v1162, %v1391
  %v1393 = vpop.f32.mrf.mxu0
  %v1394 = vpop.f32.mrf.mxu0
  %v1395 = vadd.f32 %v1162, %v1394
  %v1396 = vpop.f32.mrf.mxu0
  %1397 = vdwg.mxu0
  %v1398 = vmax.f32 %v1272, 0.0
  %v1399 = vmax.f32 %v1275, 0.0
  %v1400 = vmax.f32 %v1280, 0.0
  %v1401 = vmax.f32 %v1283, 0.0
  %v1402 = vmax.f32 %v1288, 0.0
  %v1403 = vmax.f32 %v1291, 0.0
  %v1404 = vmax.f32 %v1296, 0.0
  %v1405 = vmax.f32 %v1299, 0.0
  %v1406 = vmax.f32 %v1304, 0.0
  %v1407 = vmax.f32 %v1307, 0.0
  %v1408 = vmax.f32 %v1312, 0.0
  %v1409 = vmax.f32 %v1315, 0.0
  %v1410 = vmax.f32 %v1320, 0.0
  %v1411 = vmax.f32 %v1323, 0.0
  %v1412 = vmax.f32 %v1328, 0.0
  %v1413 = vmax.f32 %v1331, 0.0
  %v1414 = vmax.f32 %v1336, 0.0
  %v1415 = vmax.f32 %v1339, 0.0
  %v1416 = vmax.f32 %v1344, 0.0
  %v1417 = vmax.f32 %v1347, 0.0
  %v1418 = vmax.f32 %v1352, 0.0
  %v1419 = vmax.f32 %v1355, 0.0
  %v1420 = vmax.f32 %v1360, 0.0
  %v1421 = vmax.f32 %v1363, 0.0
  %v1422 = vmax.f32 %v1368, 0.0
  %v1423 = vmax.f32 %v1371, 0.0
  %v1424 = vmax.f32 %v1376, 0.0
  %v1425 = vmax.f32 %v1379, 0.0
  %v1426 = vmax.f32 %v1384, 0.0
  %v1427 = vmax.f32 %v1387, 0.0
  %v1428 = vmax.f32 %v1392, 0.0
  %v1429 = vmax.f32 %v1395, 0.0
  %v1430 = vpack.c.bf16 %v1399, %v1398
  %v1431 = vpack.c.bf16 %v1401, %v1400
  %v1432 = vpack.c.bf16 %v1403, %v1402
  %v1433 = vpack.c.bf16 %v1405, %v1404
  %v1434 = vpack.c.bf16 %v1407, %v1406
  %v1435 = vpack.c.bf16 %v1409, %v1408
  %v1436 = vpack.c.bf16 %v1411, %v1410
  %v1437 = vpack.c.bf16 %v1413, %v1412
  %v1438 = vpack.c.bf16 %v1415, %v1414
  %v1439 = vpack.c.bf16 %v1417, %v1416
  %v1440 = vpack.c.bf16 %v1419, %v1418
  %v1441 = vpack.c.bf16 %v1421, %v1420
  %v1442 = vpack.c.bf16 %v1423, %v1422
  %v1443 = vpack.c.bf16 %v1425, %v1424
  %v1444 = vpack.c.bf16 %v1427, %v1426
  %v1445 = vpack.c.bf16 %v1429, %v1428
  %v1446 = vld [vmem:[%s9] sm:$0xf]
  %v1447 = vld [vmem:[%s9 + $0x4] sm:$0xf]
  %v1448 = vld [vmem:[%s9 + $0x8] sm:$0xf]
  %v1449 = vld [vmem:[%s9 + $0xc] sm:$0xf]
  %v1450 = vld [vmem:[%s10] sm:$0x1]
  %v1452 = vlaneseq
  %v1453 = vshrl.u32 %v1452, 7
  %v1454 = vsub.s32 0, %v1453
  %v1455 = vrot.slane %v1450, %v1454
  %v1461 = vunpack.c.l.b16 %v1446
  %v1462 = vunpack.c.l.b16 %v1447
  %v1463 = vunpack.c.l.b16 %v1448
  %v1464 = vunpack.c.l.b16 %v1449
  %v1465 = vpack.c.b16 %v1462, %v1461
  %v1466 = vpack.c.b16 %v1464, %v1463
  %v1470 = vsel %vm187, %v1430, 0
  %v1473 = vsel %vm187, %v1431, 0
  %v1476 = vsel %vm187, %v1432, 0
  %v1479 = vsel %vm187, %v1433, 0
  %v1482 = vsel %vm187, %v1434, 0
  %v1485 = vsel %vm187, %v1435, 0
  %v1488 = vsel %vm187, %v1436, 0
  %v1491 = vsel %vm187, %v1437, 0
  %v1494 = vsel %vm187, %v1438, 0
  %v1497 = vsel %vm187, %v1439, 0
  %v1500 = vsel %vm187, %v1440, 0
  %v1503 = vsel %vm187, %v1441, 0
  %v1506 = vsel %vm187, %v1442, 0
  %v1509 = vsel %vm187, %v1443, 0
  %v1512 = vsel %vm187, %v1444, 0
  %v1515 = vsel %vm187, %v1445, 0
  %1517 = vmatprep.subr.bf16.mxu0 0
  %1518 = vmatpush1.bf16.msra.mxu0 0
  %1519 = vmatprep.subr.bf16.mxu0 0
  %1520 = vmatpush1.bf16.msra.mxu0 0
  %1521 = vmatprep.subr.bf16.mxu0 0
  %1522 = vmatpush1.bf16.msra.mxu0 0
  %1523 = vmatprep.subr.bf16.mxu0 0
  %1524 = vmatpush1.bf16.msra.mxu0 0
  %1525 = vmatprep.subr.bf16.mxu0 0
  %1526 = vmatpush1.bf16.msra.mxu0 0
  %1527 = vmatprep.subr.bf16.mxu0 0
  %1528 = vmatpush1.bf16.msra.mxu0 0
  %1529 = vmatprep.subr.bf16.mxu0 0
  %1530 = vmatpush1.bf16.msra.mxu0 %v1466
  %1531 = vmatprep.subr.bf16.mxu0 0
  %1532 = vmatpush1.bf16.msra.mxu0 %v1465
  %1533 = vmatprep.subr.bf16.mxu0 0
  %1534 = vmatpush2.bf16.msra.mxu0 0
  %1535 = vmatprep.subr.bf16.mxu0 0
  %1536 = vmatpush2.bf16.msra.mxu0 0
  %1537 = vmatprep.subr.bf16.mxu0 0
  %1538 = vmatpush2.bf16.msra.mxu0 0
  %1539 = vmatprep.subr.bf16.mxu0 0
  %1540 = vmatpush2.bf16.msra.mxu0 0
  %1541 = vmatprep.subr.bf16.mxu0 0
  %1542 = vmatpush2.bf16.msra.mxu0 0
  %1543 = vmatprep.subr.bf16.mxu0 0
  %1544 = vmatpush2.bf16.msra.mxu0 0
  %1545 = vmatprep.subr.bf16.mxu0 0
  %1546 = vmatpush2.bf16.msra.mxu0 0
  %1547 = vmatprep.subr.bf16.mxu0 0
  %1548 = vmatpush2.bf16.msra.mxu0 0
  %1549 = vmatprep.mubr.bf16.mxu0 0
  %1550 = vmatmul.mubr.bf16.gmra.mxu0 %v1470
  %v1551 = vpop.f32.mrf.mxu0
  %v1552 = vadd.f32 %v1455, %v1551
  %v1553 = vpop.f32.mrf.mxu0
  %v1554 = vpop.f32.mrf.mxu0
  %v1555 = vadd.f32 %v1455, %v1554
  %v1556 = vpop.f32.mrf.mxu0
  %1557 = vmatprep.mubr.bf16.mxu0 0
  %1558 = vmatmul.mubr.bf16.gmra.mxu0 %v1473
  %v1559 = vpop.f32.mrf.mxu0
  %v1560 = vadd.f32 %v1455, %v1559
  %v1561 = vpop.f32.mrf.mxu0
  %v1562 = vpop.f32.mrf.mxu0
  %v1563 = vadd.f32 %v1455, %v1562
  %v1564 = vpop.f32.mrf.mxu0
  %1565 = vmatprep.mubr.bf16.mxu0 0
  %1566 = vmatmul.mubr.bf16.gmra.mxu0 %v1476
  %v1567 = vpop.f32.mrf.mxu0
  %v1568 = vadd.f32 %v1455, %v1567
  %v1569 = vpop.f32.mrf.mxu0
  %v1570 = vpop.f32.mrf.mxu0
  %v1571 = vadd.f32 %v1455, %v1570
  %v1572 = vpop.f32.mrf.mxu0
  %1573 = vmatprep.mubr.bf16.mxu0 0
  %1574 = vmatmul.mubr.bf16.gmra.mxu0 %v1479
  %v1575 = vpop.f32.mrf.mxu0
  %v1576 = vadd.f32 %v1455, %v1575
  %v1577 = vpop.f32.mrf.mxu0
  %v1578 = vpop.f32.mrf.mxu0
  %v1579 = vadd.f32 %v1455, %v1578
  %v1580 = vpop.f32.mrf.mxu0
  %1581 = vmatprep.mubr.bf16.mxu0 0
  %1582 = vmatmul.mubr.bf16.gmra.mxu0 %v1482
  %v1583 = vpop.f32.mrf.mxu0
  %v1584 = vadd.f32 %v1455, %v1583
  %v1585 = vpop.f32.mrf.mxu0
  %v1586 = vpop.f32.mrf.mxu0
  %v1587 = vadd.f32 %v1455, %v1586
  %v1588 = vpop.f32.mrf.mxu0
  %1589 = vmatprep.mubr.bf16.mxu0 0
  %1590 = vmatmul.mubr.bf16.gmra.mxu0 %v1485
  %v1591 = vpop.f32.mrf.mxu0
  %v1592 = vadd.f32 %v1455, %v1591
  %v1593 = vpop.f32.mrf.mxu0
  %v1594 = vpop.f32.mrf.mxu0
  %v1595 = vadd.f32 %v1455, %v1594
  %v1596 = vpop.f32.mrf.mxu0
  %1597 = vmatprep.mubr.bf16.mxu0 0
  %1598 = vmatmul.mubr.bf16.gmra.mxu0 %v1488
  %v1599 = vpop.f32.mrf.mxu0
  %v1600 = vadd.f32 %v1455, %v1599
  %v1601 = vpop.f32.mrf.mxu0
  %v1602 = vpop.f32.mrf.mxu0
  %v1603 = vadd.f32 %v1455, %v1602
  %v1604 = vpop.f32.mrf.mxu0
  %1605 = vmatprep.mubr.bf16.mxu0 0
  %1606 = vmatmul.mubr.bf16.gmra.mxu0 %v1491
  %v1607 = vpop.f32.mrf.mxu0
  %v1608 = vadd.f32 %v1455, %v1607
  %v1609 = vpop.f32.mrf.mxu0
  %v1610 = vpop.f32.mrf.mxu0
  %v1611 = vadd.f32 %v1455, %v1610
  %v1612 = vpop.f32.mrf.mxu0
  %1613 = vmatprep.mubr.bf16.mxu0 0
  %1614 = vmatmul.mubr.bf16.gmra.mxu0 %v1494
  %v1615 = vpop.f32.mrf.mxu0
  %v1616 = vadd.f32 %v1455, %v1615
  %v1617 = vpop.f32.mrf.mxu0
  %v1618 = vpop.f32.mrf.mxu0
  %v1619 = vadd.f32 %v1455, %v1618
  %v1620 = vpop.f32.mrf.mxu0
  %1621 = vmatprep.mubr.bf16.mxu0 0
  %1622 = vmatmul.mubr.bf16.gmra.mxu0 %v1497
  %v1623 = vpop.f32.mrf.mxu0
  %v1624 = vadd.f32 %v1455, %v1623
  %v1625 = vpop.f32.mrf.mxu0
  %v1626 = vpop.f32.mrf.mxu0
  %v1627 = vadd.f32 %v1455, %v1626
  %v1628 = vpop.f32.mrf.mxu0
  %1629 = vmatprep.mubr.bf16.mxu0 0
  %1630 = vmatmul.mubr.bf16.gmra.mxu0 %v1500
  %v1631 = vpop.f32.mrf.mxu0
  %v1632 = vadd.f32 %v1455, %v1631
  %v1633 = vpop.f32.mrf.mxu0
  %v1634 = vpop.f32.mrf.mxu0
  %v1635 = vadd.f32 %v1455, %v1634
  %v1636 = vpop.f32.mrf.mxu0
  %1637 = vmatprep.mubr.bf16.mxu0 0
  %1638 = vmatmul.mubr.bf16.gmra.mxu0 %v1503
  %v1639 = vpop.f32.mrf.mxu0
  %v1640 = vadd.f32 %v1455, %v1639
  %v1641 = vpop.f32.mrf.mxu0
  %v1642 = vpop.f32.mrf.mxu0
  %v1643 = vadd.f32 %v1455, %v1642
  %v1644 = vpop.f32.mrf.mxu0
  %1645 = vmatprep.mubr.bf16.mxu0 0
  %1646 = vmatmul.mubr.bf16.gmra.mxu0 %v1506
  %v1647 = vpop.f32.mrf.mxu0
  %v1648 = vadd.f32 %v1455, %v1647
  %v1649 = vpop.f32.mrf.mxu0
  %v1650 = vpop.f32.mrf.mxu0
  %v1651 = vadd.f32 %v1455, %v1650
  %v1652 = vpop.f32.mrf.mxu0
  %1653 = vmatprep.mubr.bf16.mxu0 0
  %1654 = vmatmul.mubr.bf16.gmra.mxu0 %v1509
  %v1655 = vpop.f32.mrf.mxu0
  %v1656 = vadd.f32 %v1455, %v1655
  %v1657 = vpop.f32.mrf.mxu0
  %v1658 = vpop.f32.mrf.mxu0
  %v1659 = vadd.f32 %v1455, %v1658
  %v1660 = vpop.f32.mrf.mxu0
  %1661 = vmatprep.mubr.bf16.mxu0 0
  %1662 = vmatmul.mubr.bf16.gmra.mxu0 %v1512
  %v1663 = vpop.f32.mrf.mxu0
  %v1664 = vadd.f32 %v1455, %v1663
  %v1665 = vpop.f32.mrf.mxu0
  %v1666 = vpop.f32.mrf.mxu0
  %v1667 = vadd.f32 %v1455, %v1666
  %v1668 = vpop.f32.mrf.mxu0
  %1669 = vmatprep.mubr.bf16.mxu0 0
  %1670 = vmatmul.mubr.bf16.gmra.mxu0 %v1515
  %v1671 = vpop.f32.mrf.mxu0
  %v1672 = vadd.f32 %v1455, %v1671
  %v1673 = vpop.f32.mrf.mxu0
  %v1674 = vpop.f32.mrf.mxu0
  %v1675 = vadd.f32 %v1455, %v1674
  %v1676 = vpop.f32.mrf.mxu0
  %1677 = vdwg.mxu0
  %1678 = vst [vmem:[%s11] sm:$0xff] %v1552
  %1679 = vst [vmem:[%s11 + $0x8] sm:$0xff] %v1555
  %1680 = vst [vmem:[%s11 + $0x10] sm:$0xff] %v1560
  %1681 = vst [vmem:[%s11 + $0x18] sm:$0xff] %v1563
  %1682 = vst [vmem:[%s11 + $0x20] sm:$0xff] %v1568
  %1683 = vst [vmem:[%s11 + $0x28] sm:$0xff] %v1571
  %1684 = vst [vmem:[%s11 + $0x30] sm:$0xff] %v1576
  %1685 = vst [vmem:[%s11 + $0x38] sm:$0xff] %v1579
  %1686 = vst [vmem:[%s11 + $0x40] sm:$0xff] %v1584
  %1687 = vst [vmem:[%s11 + $0x48] sm:$0xff] %v1587
  %1688 = vst [vmem:[%s11 + $0x50] sm:$0xff] %v1592
  %1689 = vst [vmem:[%s11 + $0x58] sm:$0xff] %v1595
  %1690 = vst [vmem:[%s11 + $0x60] sm:$0xff] %v1600
  %1691 = vst [vmem:[%s11 + $0x68] sm:$0xff] %v1603
  %1692 = vst [vmem:[%s11 + $0x70] sm:$0xff] %v1608
  %1693 = vst [vmem:[%s11 + $0x78] sm:$0xff] %v1611
  %1694 = vst [vmem:[%s11 + $0x80] sm:$0xff] %v1616
  %1695 = vst [vmem:[%s11 + $0x88] sm:$0xff] %v1619
  %1696 = vst [vmem:[%s11 + $0x90] sm:$0xff] %v1624
  %1697 = vst [vmem:[%s11 + $0x98] sm:$0xff] %v1627
  %1698 = vst [vmem:[%s11 + $0xa0] sm:$0xff] %v1632
  %1699 = vst [vmem:[%s11 + $0xa8] sm:$0xff] %v1635
  %1700 = vst [vmem:[%s11 + $0xb0] sm:$0xff] %v1640
  %1701 = vst [vmem:[%s11 + $0xb8] sm:$0xff] %v1643
  %1702 = vst [vmem:[%s11 + $0xc0] sm:$0xff] %v1648
  %1703 = vst [vmem:[%s11 + $0xc8] sm:$0xff] %v1651
  %1704 = vst [vmem:[%s11 + $0xd0] sm:$0xff] %v1656
  %1705 = vst [vmem:[%s11 + $0xd8] sm:$0xff] %v1659
  %1706 = vst [vmem:[%s11 + $0xe0] sm:$0xff] %v1664
  %1707 = vst [vmem:[%s11 + $0xe8] sm:$0xff] %v1667
  %1708 = vst [vmem:[%s11 + $0xf0] sm:$0xff] %v1672
  %1709 = vst [vmem:[%s11 + $0xf8] sm:$0xff] %v1675
  // Predicated region
  $region46: #{generator_forward.1} parent=0 // pred_check
    _
  $region47: #{generator_forward.1} parent=0 // pred_check_branch
    %1711 = sbr.rel (0) target = $region49
  $region48: #{generator_forward.1} parent=0 // pred_region
    _
  $region49: #{generator_forward.1} parent=0 // pred_fallthru
    _
  // Predicated region
  $region50: #{generator_forward.1} parent=0 // pred_check
    _
  $region51: #{generator_forward.1} parent=0 // pred_check_branch
    %1713 = sbr.rel (0) target = $region53
  $region52: #{generator_forward.1} parent=0 // pred_region
    _
  $region53: #{generator_forward.1} parent=0 // pred_fallthru
    _

</llo_original>
